<compile_context>
chip_gen: v7x
topology: tpu7x:2x2x1
jax: 0.10.0
libtpu: 0.0.40
codegen_flags: <defaults>
</compile_context>

<pallas_src>
import jax
import jax.numpy as jnp
from jax.experimental import pallas as pl
from jax.experimental.pallas import tpu as pltpu

K = 8           # kernel size of ConvTranspose2d(1, 3, 8)
CO = 3          # output channels
LANES = 128
GROUP = 43      # lane stride between the 3 channel groups (2*43 + 30 <= 128)


def conv_transpose_kernel(x_ref, w_ref, b_ref, o_ref, xrep_ref, acc_ref):
    # x_ref   : (N, H, W)   f32  raw images (no padding)
    # w_ref   : (K*K, 128)  f32  per-lane flipped weights
    #                            (lanes of group co hold w[0, co, K-1-kh, K-1-kw])
    # b_ref   : (1, 128)    f32  per-lane bias
    # o_ref   : (N, OHP,128)f32  packed output (channel co at lanes [co*GROUP, ...))
    # xrep_ref: (HPAD, 128) f32  scratch: zero-padded input replicated into 3 groups
    # acc_ref : (OHP, 128)  f32  scratch: per-image packed accumulator
    n_img = x_ref.shape[0]
    h = x_ref.shape[1]
    w_in = x_ref.shape[2]
    ohp = o_ref.shape[1]

    # Zero the padded scratch once; only the interiors are rewritten per image.
    xrep_ref[...] = jnp.zeros_like(xrep_ref)

    def body(n, carry):
        xv = x_ref[n]                                            # (H, W)
        # Place the image into the interior of each channel's lane group.
        for co in range(CO):
            lo = co * GROUP + (K - 1)
            xrep_ref[K - 1:K - 1 + h, lo:lo + w_in] = xv

        # Per-kw partial accumulators: no lane shifts inside the tap loop.
        # qs[kw][r, L] = sum_kh xrep[r+kh, L] * wflip[group(L), kh, kw]
        qs = [None] * K
        for kh in range(K):
            rows = xrep_ref[kh:kh + ohp, :]                      # (OHP, 128)
            for kw in range(K):
                t = kh * K + kw
                prod = rows * w_ref[t:t + 1, :]                  # (OHP,128)*(1,128)
                qs[kw] = prod if kh == 0 else qs[kw] + prod

        # Combine: out[r, L] = bias[L] + sum_kw qs[kw][r, L + kw]
        acc_ref[...] = qs[0] + b_ref[...]
        for kw in range(1, K):
            acc_ref[:, 0:LANES - kw] = (acc_ref[:, 0:LANES - kw]
                                        + qs[kw][:, kw:LANES])

        # One fully dense (OHP, 128) store per image.
        o_ref[n] = acc_ref[...]
        return carry

    jax.lax.fori_loop(0, n_img, body, 0)


@jax.jit
def conv_transpose2d(x, w, b):
    """x: (N, 1, H, W) f32; w: (1, Co, K, K) torch ConvTranspose2d layout; b: (Co,)."""
    n, ci, h, w_in = x.shape
    assert ci == 1 and w.shape == (1, CO, K, K) and b.shape == (CO,)
    oh, ow = h + K - 1, w_in + K - 1
    ohp = ((oh + 7) // 8) * 8                    # 24: sublane-padded output rows
    hpad = ((ohp + K - 1 + 7) // 8) * 8          # 32: scratch rows
    wp = w_in + 2 * (K - 1)                      # 30: padded input width
    assert GROUP >= wp and (CO - 1) * GROUP + wp <= LANES
    assert (LANES - 1) // GROUP == CO - 1        # lane // GROUP maps onto {0..Co-1}

    x_in = x.astype(jnp.float32).reshape(n, h, w_in)

    # Per-lane tables: lane L belongs to channel group L // GROUP.
    group = jnp.arange(LANES, dtype=jnp.int32) // GROUP                  # (128,)
    wflip = w[0, :, ::-1, ::-1].reshape(CO, K * K).astype(jnp.float32)   # (Co, K*K)
    w_tab = jnp.take(wflip, group, axis=0).T                             # (K*K, 128)
    b_tab = jnp.take(b.astype(jnp.float32), group).reshape(1, LANES)     # (1, 128)

    out_packed = pl.pallas_call(
        conv_transpose_kernel,
        out_shape=jax.ShapeDtypeStruct((n, ohp, LANES), jnp.float32),
        grid=(1,),
        in_specs=[
            pl.BlockSpec((n, h, w_in), lambda i: (0, 0, 0)),
            pl.BlockSpec((K * K, LANES), lambda i: (0, 0)),
            pl.BlockSpec((1, LANES), lambda i: (0, 0)),
        ],
        out_specs=pl.BlockSpec((n, ohp, LANES), lambda i: (0, 0, 0)),
        scratch_shapes=[
            pltpu.VMEM((hpad, LANES), jnp.float32),   # padded/replicated input
            pltpu.VMEM((ohp, LANES), jnp.float32),    # packed accumulator
        ],
        compiler_params=pltpu.CompilerParams(
            dimension_semantics=("arbitrary",)),
    )(x_in, w_tab, b_tab)

    # Unpack lanes -> (N, Co, OH, OW); tiny slice/stack inside the same jit.
    chans = [out_packed[:, :oh, co * GROUP:co * GROUP + ow] for co in range(CO)]
    return jnp.stack(chans, axis=1)


if __name__ == "__main__":
    key = jax.random.PRNGKey(0)
    kx, kw_key, kb_key = jax.random.split(key, 3)

    # Input shape from the module: x1 = torch.randn(2, 1, 16, 16)
    x = jax.random.normal(kx, (2, 1, 16, 16), dtype=jnp.float32)

    # ConvTranspose2d(1, 3, 8): weight (in=1, out=3, 8, 8), bias (3,)
    fan_in = 1 * K * K
    bound = 1.0 / (fan_in ** 0.5)
    w = jax.random.uniform(kw_key, (1, CO, K, K), jnp.float32, -bound, bound)
    b = jax.random.uniform(kb_key, (CO,), jnp.float32, -bound, bound)

    out = conv_transpose2d(x, w, b)
    out = jax.block_until_ready(out)
    assert out.shape == (2, 3, 23, 23), out.shape

    # Independent reference: transposed conv == full-padded conv with flipped,
    # channel-swapped kernel (via XLA's conv).
    w_oihw = jnp.transpose(w[:, :, ::-1, ::-1], (1, 0, 2, 3))  # (Co, Ci, K, K)
    ref = jax.lax.conv_general_dilated(
        x, w_oihw, window_strides=(1, 1),
        padding=[(K - 1, K - 1), (K - 1, K - 1)],
        dimension_numbers=("NCHW", "OIHW", "NCHW"),
        precision=jax.lax.Precision.HIGHEST,
    ) + b[None, :, None, None]
    assert jnp.allclose(out, ref, atol=1e-3, rtol=1e-3), float(
        jnp.max(jnp.abs(out - ref)))

    print("KERNEL_OK")
</pallas_src>

<mosaic_0001>
module attributes {stable_mosaic.version = 11 : i64} {
  func.func @conv_transpose_kernel(%arg0: i32, %arg1: memref<2x16x16xf32, #tpu.memory_space<vmem>>, %arg2: memref<64x128xf32, #tpu.memory_space<vmem>>, %arg3: memref<1x128xf32, #tpu.memory_space<vmem>>, %arg4: memref<2x24x128xf32, #tpu.memory_space<vmem>>, %arg5: memref<32x128xf32, #tpu.memory_space<vmem>>, %arg6: memref<24x128xf32, #tpu.memory_space<vmem>>) attributes {dimension_semantics = [#tpu.dimension_semantics<arbitrary>], iteration_bounds = array<i64: 1>, scalar_prefetch = 0 : i64, scratch_operands = 2 : i64, tpu.core_type = #tpu.core_type<tc>, window_params = [{pipeline_mode = #tpu.pipeline_mode<synchronous>, transform_indices = @transform_0, window_bounds = array<i64: 2, 16, 16>}, {pipeline_mode = #tpu.pipeline_mode<synchronous>, transform_indices = @transform_1, window_bounds = array<i64: 64, 128>}, {pipeline_mode = #tpu.pipeline_mode<synchronous>, transform_indices = @transform_2, window_bounds = array<i64: 1, 128>}, {pipeline_mode = #tpu.pipeline_mode<synchronous>, transform_indices = @transform_3, window_bounds = array<i64: 2, 24, 128>}]} {
    %cst = arith.constant 0.000000e+00 : f32
    %0 = vector.broadcast %cst : f32 to vector<32x128xf32>
    %c0 = arith.constant 0 : index
    %c0_0 = arith.constant 0 : index
    %1 = vector.load %arg5[%c0, %c0_0] : memref<32x128xf32, #tpu.memory_space<vmem>>, vector<32x128xf32>
    tpu.vector_store %arg5[%c0, %c0_0], %0 {strides = array<i32>} : memref<32x128xf32, #tpu.memory_space<vmem>>, vector<32x128xf32>,
    %c0_i32 = arith.constant 0 : i32
    %c2_i32 = arith.constant 2 : i32
    %2 = arith.addi %c0_i32, %c2_i32 : i32
    %c1_i32 = arith.constant 1 : i32
    scf.for %arg7 = %c0_i32 to %2 step %c1_i32  : i32 {
      %3 = arith.index_cast %arg7 : i32 to index
      %c0_2 = arith.constant 0 : index
      %c0_3 = arith.constant 0 : index
      %4 = vector.load %arg1[%3, %c0_2, %c0_3] : memref<2x16x16xf32, #tpu.memory_space<vmem>>, vector<1x16x16xf32>
      %5 = vector.shape_cast %4 : vector<1x16x16xf32> to vector<16x16xf32>
      %c7 = arith.constant 7 : index
      %c7_4 = arith.constant 7 : index
      %6 = vector.load %arg5[%c7, %c7_4] : memref<32x128xf32, #tpu.memory_space<vmem>>, vector<16x16xf32>
      tpu.vector_store %arg5[%c7, %c7_4], %5 {strides = array<i32>} : memref<32x128xf32, #tpu.memory_space<vmem>>, vector<16x16xf32>,
      %c7_5 = arith.constant 7 : index
      %c50 = arith.constant 50 : index
      %7 = vector.load %arg5[%c7_5, %c50] : memref<32x128xf32, #tpu.memory_space<vmem>>, vector<16x16xf32>
      tpu.vector_store %arg5[%c7_5, %c50], %5 {strides = array<i32>} : memref<32x128xf32, #tpu.memory_space<vmem>>, vector<16x16xf32>,
      %c7_6 = arith.constant 7 : index
      %c93 = arith.constant 93 : index
      %8 = vector.load %arg5[%c7_6, %c93] : memref<32x128xf32, #tpu.memory_space<vmem>>, vector<16x16xf32>
      tpu.vector_store %arg5[%c7_6, %c93], %5 {strides = array<i32>} : memref<32x128xf32, #tpu.memory_space<vmem>>, vector<16x16xf32>,
      %c0_7 = arith.constant 0 : index
      %c0_8 = arith.constant 0 : index
      %9 = vector.load %arg5[%c0_7, %c0_8] : memref<32x128xf32, #tpu.memory_space<vmem>>, vector<24x128xf32>
      %c0_9 = arith.constant 0 : index
      %c0_10 = arith.constant 0 : index
      %10 = vector.load %arg2[%c0_9, %c0_10] : memref<64x128xf32, #tpu.memory_space<vmem>>, vector<1x128xf32>
      %11 = vector.broadcast %10 : vector<1x128xf32> to vector<24x128xf32>
      %12 = arith.mulf %9, %11 : vector<24x128xf32>
      %c1 = arith.constant 1 : index
      %c0_11 = arith.constant 0 : index
      %13 = vector.load %arg2[%c1, %c0_11] : memref<64x128xf32, #tpu.memory_space<vmem>>, vector<1x128xf32>
      %14 = vector.broadcast %13 : vector<1x128xf32> to vector<24x128xf32>
      %15 = arith.mulf %9, %14 : vector<24x128xf32>
      %c2 = arith.constant 2 : index
      %c0_12 = arith.constant 0 : index
      %16 = vector.load %arg2[%c2, %c0_12] : memref<64x128xf32, #tpu.memory_space<vmem>>, vector<1x128xf32>
      %17 = vector.broadcast %16 : vector<1x128xf32> to vector<24x128xf32>
      %18 = arith.mulf %9, %17 : vector<24x128xf32>
      %c3 = arith.constant 3 : index
      %c0_13 = arith.constant 0 : index
      %19 = vector.load %arg2[%c3, %c0_13] : memref<64x128xf32, #tpu.memory_space<vmem>>, vector<1x128xf32>
      %20 = vector.broadcast %19 : vector<1x128xf32> to vector<24x128xf32>
      %21 = arith.mulf %9, %20 : vector<24x128xf32>
      %c4 = arith.constant 4 : index
      %c0_14 = arith.constant 0 : index
      %22 = vector.load %arg2[%c4, %c0_14] : memref<64x128xf32, #tpu.memory_space<vmem>>, vector<1x128xf32>
      %23 = vector.broadcast %22 : vector<1x128xf32> to vector<24x128xf32>
      %24 = arith.mulf %9, %23 : vector<24x128xf32>
      %c5 = arith.constant 5 : index
      %c0_15 = arith.constant 0 : index
      %25 = vector.load %arg2[%c5, %c0_15] : memref<64x128xf32, #tpu.memory_space<vmem>>, vector<1x128xf32>
      %26 = vector.broadcast %25 : vector<1x128xf32> to vector<24x128xf32>
      %27 = arith.mulf %9, %26 : vector<24x128xf32>
      %c6 = arith.constant 6 : index
      %c0_16 = arith.constant 0 : index
      %28 = vector.load %arg2[%c6, %c0_16] : memref<64x128xf32, #tpu.memory_space<vmem>>, vector<1x128xf32>
      %29 = vector.broadcast %28 : vector<1x128xf32> to vector<24x128xf32>
      %30 = arith.mulf %9, %29 : vector<24x128xf32>
      %c7_17 = arith.constant 7 : index
      %c0_18 = arith.constant 0 : index
      %31 = vector.load %arg2[%c7_17, %c0_18] : memref<64x128xf32, #tpu.memory_space<vmem>>, vector<1x128xf32>
      %32 = vector.broadcast %31 : vector<1x128xf32> to vector<24x128xf32>
      %33 = arith.mulf %9, %32 : vector<24x128xf32>
      %c1_19 = arith.constant 1 : index
      %c0_20 = arith.constant 0 : index
      %34 = vector.load %arg5[%c1_19, %c0_20] : memref<32x128xf32, #tpu.memory_space<vmem>>, vector<24x128xf32>
      %c8 = arith.constant 8 : index
      %c0_21 = arith.constant 0 : index
      %35 = vector.load %arg2[%c8, %c0_21] : memref<64x128xf32, #tpu.memory_space<vmem>>, vector<1x128xf32>
      %36 = vector.broadcast %35 : vector<1x128xf32> to vector<24x128xf32>
      %37 = arith.mulf %34, %36 : vector<24x128xf32>
      %38 = arith.addf %12, %37 : vector<24x128xf32>
      %c9 = arith.constant 9 : index
      %c0_22 = arith.constant 0 : index
      %39 = vector.load %arg2[%c9, %c0_22] : memref<64x128xf32, #tpu.memory_space<vmem>>, vector<1x128xf32>
      %40 = vector.broadcast %39 : vector<1x128xf32> to vector<24x128xf32>
      %41 = arith.mulf %34, %40 : vector<24x128xf32>
      %42 = arith.addf %15, %41 : vector<24x128xf32>
      %c10 = arith.constant 10 : index
      %c0_23 = arith.constant 0 : index
      %43 = vector.load %arg2[%c10, %c0_23] : memref<64x128xf32, #tpu.memory_space<vmem>>, vector<1x128xf32>
      %44 = vector.broadcast %43 : vector<1x128xf32> to vector<24x128xf32>
      %45 = arith.mulf %34, %44 : vector<24x128xf32>
      %46 = arith.addf %18, %45 : vector<24x128xf32>
      %c11 = arith.constant 11 : index
      %c0_24 = arith.constant 0 : index
      %47 = vector.load %arg2[%c11, %c0_24] : memref<64x128xf32, #tpu.memory_space<vmem>>, vector<1x128xf32>
      %48 = vector.broadcast %47 : vector<1x128xf32> to vector<24x128xf32>
      %49 = arith.mulf %34, %48 : vector<24x128xf32>
      %50 = arith.addf %21, %49 : vector<24x128xf32>
      %c12 = arith.constant 12 : index
      %c0_25 = arith.constant 0 : index
      %51 = vector.load %arg2[%c12, %c0_25] : memref<64x128xf32, #tpu.memory_space<vmem>>, vector<1x128xf32>
      %52 = vector.broadcast %51 : vector<1x128xf32> to vector<24x128xf32>
      %53 = arith.mulf %34, %52 : vector<24x128xf32>
      %54 = arith.addf %24, %53 : vector<24x128xf32>
      %c13 = arith.constant 13 : index
      %c0_26 = arith.constant 0 : index
      %55 = vector.load %arg2[%c13, %c0_26] : memref<64x128xf32, #tpu.memory_space<vmem>>, vector<1x128xf32>
      %56 = vector.broadcast %55 : vector<1x128xf32> to vector<24x128xf32>
      %57 = arith.mulf %34, %56 : vector<24x128xf32>
      %58 = arith.addf %27, %57 : vector<24x128xf32>
      %c14 = arith.constant 14 : index
      %c0_27 = arith.constant 0 : index
      %59 = vector.load %arg2[%c14, %c0_27] : memref<64x128xf32, #tpu.memory_space<vmem>>, vector<1x128xf32>
      %60 = vector.broadcast %59 : vector<1x128xf32> to vector<24x128xf32>
      %61 = arith.mulf %34, %60 : vector<24x128xf32>
      %62 = arith.addf %30, %61 : vector<24x128xf32>
      %c15 = arith.constant 15 : index
      %c0_28 = arith.constant 0 : index
      %63 = vector.load %arg2[%c15, %c0_28] : memref<64x128xf32, #tpu.memory_space<vmem>>, vector<1x128xf32>
      %64 = vector.broadcast %63 : vector<1x128xf32> to vector<24x128xf32>
      %65 = arith.mulf %34, %64 : vector<24x128xf32>
      %66 = arith.addf %33, %65 : vector<24x128xf32>
      %c2_29 = arith.constant 2 : index
      %c0_30 = arith.constant 0 : index
      %67 = vector.load %arg5[%c2_29, %c0_30] : memref<32x128xf32, #tpu.memory_space<vmem>>, vector<24x128xf32>
      %c16 = arith.constant 16 : index
      %c0_31 = arith.constant 0 : index
      %68 = vector.load %arg2[%c16, %c0_31] : memref<64x128xf32, #tpu.memory_space<vmem>>, vector<1x128xf32>
      %69 = vector.broadcast %68 : vector<1x128xf32> to vector<24x128xf32>
      %70 = arith.mulf %67, %69 : vector<24x128xf32>
      %71 = arith.addf %38, %70 : vector<24x128xf32>
      %c17 = arith.constant 17 : index
      %c0_32 = arith.constant 0 : index
      %72 = vector.load %arg2[%c17, %c0_32] : memref<64x128xf32, #tpu.memory_space<vmem>>, vector<1x128xf32>
      %73 = vector.broadcast %72 : vector<1x128xf32> to vector<24x128xf32>
      %74 = arith.mulf %67, %73 : vector<24x128xf32>
      %75 = arith.addf %42, %74 : vector<24x128xf32>
      %c18 = arith.constant 18 : index
      %c0_33 = arith.constant 0 : index
      %76 = vector.load %arg2[%c18, %c0_33] : memref<64x128xf32, #tpu.memory_space<vmem>>, vector<1x128xf32>
      %77 = vector.broadcast %76 : vector<1x128xf32> to vector<24x128xf32>
      %78 = arith.mulf %67, %77 : vector<24x128xf32>
      %79 = arith.addf %46, %78 : vector<24x128xf32>
      %c19 = arith.constant 19 : index
      %c0_34 = arith.constant 0 : index
      %80 = vector.load %arg2[%c19, %c0_34] : memref<64x128xf32, #tpu.memory_space<vmem>>, vector<1x128xf32>
      %81 = vector.broadcast %80 : vector<1x128xf32> to vector<24x128xf32>
      %82 = arith.mulf %67, %81 : vector<24x128xf32>
      %83 = arith.addf %50, %82 : vector<24x128xf32>
      %c20 = arith.constant 20 : index
      %c0_35 = arith.constant 0 : index
      %84 = vector.load %arg2[%c20, %c0_35] : memref<64x128xf32, #tpu.memory_space<vmem>>, vector<1x128xf32>
      %85 = vector.broadcast %84 : vector<1x128xf32> to vector<24x128xf32>
      %86 = arith.mulf %67, %85 : vector<24x128xf32>
      %87 = arith.addf %54, %86 : vector<24x128xf32>
      %c21 = arith.constant 21 : index
      %c0_36 = arith.constant 0 : index
      %88 = vector.load %arg2[%c21, %c0_36] : memref<64x128xf32, #tpu.memory_space<vmem>>, vector<1x128xf32>
      %89 = vector.broadcast %88 : vector<1x128xf32> to vector<24x128xf32>
      %90 = arith.mulf %67, %89 : vector<24x128xf32>
      %91 = arith.addf %58, %90 : vector<24x128xf32>
      %c22 = arith.constant 22 : index
      %c0_37 = arith.constant 0 : index
      %92 = vector.load %arg2[%c22, %c0_37] : memref<64x128xf32, #tpu.memory_space<vmem>>, vector<1x128xf32>
      %93 = vector.broadcast %92 : vector<1x128xf32> to vector<24x128xf32>
      %94 = arith.mulf %67, %93 : vector<24x128xf32>
      %95 = arith.addf %62, %94 : vector<24x128xf32>
      %c23 = arith.constant 23 : index
      %c0_38 = arith.constant 0 : index
      %96 = vector.load %arg2[%c23, %c0_38] : memref<64x128xf32, #tpu.memory_space<vmem>>, vector<1x128xf32>
      %97 = vector.broadcast %96 : vector<1x128xf32> to vector<24x128xf32>
      %98 = arith.mulf %67, %97 : vector<24x128xf32>
      %99 = arith.addf %66, %98 : vector<24x128xf32>
      %c3_39 = arith.constant 3 : index
      %c0_40 = arith.constant 0 : index
      %100 = vector.load %arg5[%c3_39, %c0_40] : memref<32x128xf32, #tpu.memory_space<vmem>>, vector<24x128xf32>
      %c24 = arith.constant 24 : index
      %c0_41 = arith.constant 0 : index
      %101 = vector.load %arg2[%c24, %c0_41] : memref<64x128xf32, #tpu.memory_space<vmem>>, vector<1x128xf32>
      %102 = vector.broadcast %101 : vector<1x128xf32> to vector<24x128xf32>
      %103 = arith.mulf %100, %102 : vector<24x128xf32>
      %104 = arith.addf %71, %103 : vector<24x128xf32>
      %c25 = arith.constant 25 : index
      %c0_42 = arith.constant 0 : index
      %105 = vector.load %arg2[%c25, %c0_42] : memref<64x128xf32, #tpu.memory_space<vmem>>, vector<1x128xf32>
      %106 = vector.broadcast %105 : vector<1x128xf32> to vector<24x128xf32>
      %107 = arith.mulf %100, %106 : vector<24x128xf32>
      %108 = arith.addf %75, %107 : vector<24x128xf32>
      %c26 = arith.constant 26 : index
      %c0_43 = arith.constant 0 : index
      %109 = vector.load %arg2[%c26, %c0_43] : memref<64x128xf32, #tpu.memory_space<vmem>>, vector<1x128xf32>
      %110 = vector.broadcast %109 : vector<1x128xf32> to vector<24x128xf32>
      %111 = arith.mulf %100, %110 : vector<24x128xf32>
      %112 = arith.addf %79, %111 : vector<24x128xf32>
      %c27 = arith.constant 27 : index
      %c0_44 = arith.constant 0 : index
      %113 = vector.load %arg2[%c27, %c0_44] : memref<64x128xf32, #tpu.memory_space<vmem>>, vector<1x128xf32>
      %114 = vector.broadcast %113 : vector<1x128xf32> to vector<24x128xf32>
      %115 = arith.mulf %100, %114 : vector<24x128xf32>
      %116 = arith.addf %83, %115 : vector<24x128xf32>
      %c28 = arith.constant 28 : index
      %c0_45 = arith.constant 0 : index
      %117 = vector.load %arg2[%c28, %c0_45] : memref<64x128xf32, #tpu.memory_space<vmem>>, vector<1x128xf32>
      %118 = vector.broadcast %117 : vector<1x128xf32> to vector<24x128xf32>
      %119 = arith.mulf %100, %118 : vector<24x128xf32>
      %120 = arith.addf %87, %119 : vector<24x128xf32>
      %c29 = arith.constant 29 : index
      %c0_46 = arith.constant 0 : index
      %121 = vector.load %arg2[%c29, %c0_46] : memref<64x128xf32, #tpu.memory_space<vmem>>, vector<1x128xf32>
      %122 = vector.broadcast %121 : vector<1x128xf32> to vector<24x128xf32>
      %123 = arith.mulf %100, %122 : vector<24x128xf32>
      %124 = arith.addf %91, %123 : vector<24x128xf32>
      %c30 = arith.constant 30 : index
      %c0_47 = arith.constant 0 : index
      %125 = vector.load %arg2[%c30, %c0_47] : memref<64x128xf32, #tpu.memory_space<vmem>>, vector<1x128xf32>
      %126 = vector.broadcast %125 : vector<1x128xf32> to vector<24x128xf32>
      %127 = arith.mulf %100, %126 : vector<24x128xf32>
      %128 = arith.addf %95, %127 : vector<24x128xf32>
      %c31 = arith.constant 31 : index
      %c0_48 = arith.constant 0 : index
      %129 = vector.load %arg2[%c31, %c0_48] : memref<64x128xf32, #tpu.memory_space<vmem>>, vector<1x128xf32>
      %130 = vector.broadcast %129 : vector<1x128xf32> to vector<24x128xf32>
      %131 = arith.mulf %100, %130 : vector<24x128xf32>
      %132 = arith.addf %99, %131 : vector<24x128xf32>
      %c4_49 = arith.constant 4 : index
      %c0_50 = arith.constant 0 : index
      %133 = vector.load %arg5[%c4_49, %c0_50] : memref<32x128xf32, #tpu.memory_space<vmem>>, vector<24x128xf32>
      %c32 = arith.constant 32 : index
      %c0_51 = arith.constant 0 : index
      %134 = vector.load %arg2[%c32, %c0_51] : memref<64x128xf32, #tpu.memory_space<vmem>>, vector<1x128xf32>
      %135 = vector.broadcast %134 : vector<1x128xf32> to vector<24x128xf32>
      %136 = arith.mulf %133, %135 : vector<24x128xf32>
      %137 = arith.addf %104, %136 : vector<24x128xf32>
      %c33 = arith.constant 33 : index
      %c0_52 = arith.constant 0 : index
      %138 = vector.load %arg2[%c33, %c0_52] : memref<64x128xf32, #tpu.memory_space<vmem>>, vector<1x128xf32>
      %139 = vector.broadcast %138 : vector<1x128xf32> to vector<24x128xf32>
      %140 = arith.mulf %133, %139 : vector<24x128xf32>
      %141 = arith.addf %108, %140 : vector<24x128xf32>
      %c34 = arith.constant 34 : index
      %c0_53 = arith.constant 0 : index
      %142 = vector.load %arg2[%c34, %c0_53] : memref<64x128xf32, #tpu.memory_space<vmem>>, vector<1x128xf32>
      %143 = vector.broadcast %142 : vector<1x128xf32> to vector<24x128xf32>
      %144 = arith.mulf %133, %143 : vector<24x128xf32>
      %145 = arith.addf %112, %144 : vector<24x128xf32>
      %c35 = arith.constant 35 : index
      %c0_54 = arith.constant 0 : index
      %146 = vector.load %arg2[%c35, %c0_54] : memref<64x128xf32, #tpu.memory_space<vmem>>, vector<1x128xf32>
      %147 = vector.broadcast %146 : vector<1x128xf32> to vector<24x128xf32>
      %148 = arith.mulf %133, %147 : vector<24x128xf32>
      %149 = arith.addf %116, %148 : vector<24x128xf32>
      %c36 = arith.constant 36 : index
      %c0_55 = arith.constant 0 : index
      %150 = vector.load %arg2[%c36, %c0_55] : memref<64x128xf32, #tpu.memory_space<vmem>>, vector<1x128xf32>
      %151 = vector.broadcast %150 : vector<1x128xf32> to vector<24x128xf32>
      %152 = arith.mulf %133, %151 : vector<24x128xf32>
      %153 = arith.addf %120, %152 : vector<24x128xf32>
      %c37 = arith.constant 37 : index
      %c0_56 = arith.constant 0 : index
      %154 = vector.load %arg2[%c37, %c0_56] : memref<64x128xf32, #tpu.memory_space<vmem>>, vector<1x128xf32>
      %155 = vector.broadcast %154 : vector<1x128xf32> to vector<24x128xf32>
      %156 = arith.mulf %133, %155 : vector<24x128xf32>
      %157 = arith.addf %124, %156 : vector<24x128xf32>
      %c38 = arith.constant 38 : index
      %c0_57 = arith.constant 0 : index
      %158 = vector.load %arg2[%c38, %c0_57] : memref<64x128xf32, #tpu.memory_space<vmem>>, vector<1x128xf32>
      %159 = vector.broadcast %158 : vector<1x128xf32> to vector<24x128xf32>
      %160 = arith.mulf %133, %159 : vector<24x128xf32>
      %161 = arith.addf %128, %160 : vector<24x128xf32>
      %c39 = arith.constant 39 : index
      %c0_58 = arith.constant 0 : index
      %162 = vector.load %arg2[%c39, %c0_58] : memref<64x128xf32, #tpu.memory_space<vmem>>, vector<1x128xf32>
      %163 = vector.broadcast %162 : vector<1x128xf32> to vector<24x128xf32>
      %164 = arith.mulf %133, %163 : vector<24x128xf32>
      %165 = arith.addf %132, %164 : vector<24x128xf32>
      %c5_59 = arith.constant 5 : index
      %c0_60 = arith.constant 0 : index
      %166 = vector.load %arg5[%c5_59, %c0_60] : memref<32x128xf32, #tpu.memory_space<vmem>>, vector<24x128xf32>
      %c40 = arith.constant 40 : index
      %c0_61 = arith.constant 0 : index
      %167 = vector.load %arg2[%c40, %c0_61] : memref<64x128xf32, #tpu.memory_space<vmem>>, vector<1x128xf32>
      %168 = vector.broadcast %167 : vector<1x128xf32> to vector<24x128xf32>
      %169 = arith.mulf %166, %168 : vector<24x128xf32>
      %170 = arith.addf %137, %169 : vector<24x128xf32>
      %c41 = arith.constant 41 : index
      %c0_62 = arith.constant 0 : index
      %171 = vector.load %arg2[%c41, %c0_62] : memref<64x128xf32, #tpu.memory_space<vmem>>, vector<1x128xf32>
      %172 = vector.broadcast %171 : vector<1x128xf32> to vector<24x128xf32>
      %173 = arith.mulf %166, %172 : vector<24x128xf32>
      %174 = arith.addf %141, %173 : vector<24x128xf32>
      %c42 = arith.constant 42 : index
      %c0_63 = arith.constant 0 : index
      %175 = vector.load %arg2[%c42, %c0_63] : memref<64x128xf32, #tpu.memory_space<vmem>>, vector<1x128xf32>
      %176 = vector.broadcast %175 : vector<1x128xf32> to vector<24x128xf32>
      %177 = arith.mulf %166, %176 : vector<24x128xf32>
      %178 = arith.addf %145, %177 : vector<24x128xf32>
      %c43 = arith.constant 43 : index
      %c0_64 = arith.constant 0 : index
      %179 = vector.load %arg2[%c43, %c0_64] : memref<64x128xf32, #tpu.memory_space<vmem>>, vector<1x128xf32>
      %180 = vector.broadcast %179 : vector<1x128xf32> to vector<24x128xf32>
      %181 = arith.mulf %166, %180 : vector<24x128xf32>
      %182 = arith.addf %149, %181 : vector<24x128xf32>
      %c44 = arith.constant 44 : index
      %c0_65 = arith.constant 0 : index
      %183 = vector.load %arg2[%c44, %c0_65] : memref<64x128xf32, #tpu.memory_space<vmem>>, vector<1x128xf32>
      %184 = vector.broadcast %183 : vector<1x128xf32> to vector<24x128xf32>
      %185 = arith.mulf %166, %184 : vector<24x128xf32>
      %186 = arith.addf %153, %185 : vector<24x128xf32>
      %c45 = arith.constant 45 : index
      %c0_66 = arith.constant 0 : index
      %187 = vector.load %arg2[%c45, %c0_66] : memref<64x128xf32, #tpu.memory_space<vmem>>, vector<1x128xf32>
      %188 = vector.broadcast %187 : vector<1x128xf32> to vector<24x128xf32>
      %189 = arith.mulf %166, %188 : vector<24x128xf32>
      %190 = arith.addf %157, %189 : vector<24x128xf32>
      %c46 = arith.constant 46 : index
      %c0_67 = arith.constant 0 : index
      %191 = vector.load %arg2[%c46, %c0_67] : memref<64x128xf32, #tpu.memory_space<vmem>>, vector<1x128xf32>
      %192 = vector.broadcast %191 : vector<1x128xf32> to vector<24x128xf32>
      %193 = arith.mulf %166, %192 : vector<24x128xf32>
      %194 = arith.addf %161, %193 : vector<24x128xf32>
      %c47 = arith.constant 47 : index
      %c0_68 = arith.constant 0 : index
      %195 = vector.load %arg2[%c47, %c0_68] : memref<64x128xf32, #tpu.memory_space<vmem>>, vector<1x128xf32>
      %196 = vector.broadcast %195 : vector<1x128xf32> to vector<24x128xf32>
      %197 = arith.mulf %166, %196 : vector<24x128xf32>
      %198 = arith.addf %165, %197 : vector<24x128xf32>
      %c6_69 = arith.constant 6 : index
      %c0_70 = arith.constant 0 : index
      %199 = vector.load %arg5[%c6_69, %c0_70] : memref<32x128xf32, #tpu.memory_space<vmem>>, vector<24x128xf32>
      %c48 = arith.constant 48 : index
      %c0_71 = arith.constant 0 : index
      %200 = vector.load %arg2[%c48, %c0_71] : memref<64x128xf32, #tpu.memory_space<vmem>>, vector<1x128xf32>
      %201 = vector.broadcast %200 : vector<1x128xf32> to vector<24x128xf32>
      %202 = arith.mulf %199, %201 : vector<24x128xf32>
      %203 = arith.addf %170, %202 : vector<24x128xf32>
      %c49 = arith.constant 49 : index
      %c0_72 = arith.constant 0 : index
      %204 = vector.load %arg2[%c49, %c0_72] : memref<64x128xf32, #tpu.memory_space<vmem>>, vector<1x128xf32>
      %205 = vector.broadcast %204 : vector<1x128xf32> to vector<24x128xf32>
      %206 = arith.mulf %199, %205 : vector<24x128xf32>
      %207 = arith.addf %174, %206 : vector<24x128xf32>
      %c50_73 = arith.constant 50 : index
      %c0_74 = arith.constant 0 : index
      %208 = vector.load %arg2[%c50_73, %c0_74] : memref<64x128xf32, #tpu.memory_space<vmem>>, vector<1x128xf32>
      %209 = vector.broadcast %208 : vector<1x128xf32> to vector<24x128xf32>
      %210 = arith.mulf %199, %209 : vector<24x128xf32>
      %211 = arith.addf %178, %210 : vector<24x128xf32>
      %c51 = arith.constant 51 : index
      %c0_75 = arith.constant 0 : index
      %212 = vector.load %arg2[%c51, %c0_75] : memref<64x128xf32, #tpu.memory_space<vmem>>, vector<1x128xf32>
      %213 = vector.broadcast %212 : vector<1x128xf32> to vector<24x128xf32>
      %214 = arith.mulf %199, %213 : vector<24x128xf32>
      %215 = arith.addf %182, %214 : vector<24x128xf32>
      %c52 = arith.constant 52 : index
      %c0_76 = arith.constant 0 : index
      %216 = vector.load %arg2[%c52, %c0_76] : memref<64x128xf32, #tpu.memory_space<vmem>>, vector<1x128xf32>
      %217 = vector.broadcast %216 : vector<1x128xf32> to vector<24x128xf32>
      %218 = arith.mulf %199, %217 : vector<24x128xf32>
      %219 = arith.addf %186, %218 : vector<24x128xf32>
      %c53 = arith.constant 53 : index
      %c0_77 = arith.constant 0 : index
      %220 = vector.load %arg2[%c53, %c0_77] : memref<64x128xf32, #tpu.memory_space<vmem>>, vector<1x128xf32>
      %221 = vector.broadcast %220 : vector<1x128xf32> to vector<24x128xf32>
      %222 = arith.mulf %199, %221 : vector<24x128xf32>
      %223 = arith.addf %190, %222 : vector<24x128xf32>
      %c54 = arith.constant 54 : index
      %c0_78 = arith.constant 0 : index
      %224 = vector.load %arg2[%c54, %c0_78] : memref<64x128xf32, #tpu.memory_space<vmem>>, vector<1x128xf32>
      %225 = vector.broadcast %224 : vector<1x128xf32> to vector<24x128xf32>
      %226 = arith.mulf %199, %225 : vector<24x128xf32>
      %227 = arith.addf %194, %226 : vector<24x128xf32>
      %c55 = arith.constant 55 : index
      %c0_79 = arith.constant 0 : index
      %228 = vector.load %arg2[%c55, %c0_79] : memref<64x128xf32, #tpu.memory_space<vmem>>, vector<1x128xf32>
      %229 = vector.broadcast %228 : vector<1x128xf32> to vector<24x128xf32>
      %230 = arith.mulf %199, %229 : vector<24x128xf32>
      %231 = arith.addf %198, %230 : vector<24x128xf32>
      %c7_80 = arith.constant 7 : index
      %c0_81 = arith.constant 0 : index
      %232 = vector.load %arg5[%c7_80, %c0_81] : memref<32x128xf32, #tpu.memory_space<vmem>>, vector<24x128xf32>
      %c56 = arith.constant 56 : index
      %c0_82 = arith.constant 0 : index
      %233 = vector.load %arg2[%c56, %c0_82] : memref<64x128xf32, #tpu.memory_space<vmem>>, vector<1x128xf32>
      %234 = vector.broadcast %233 : vector<1x128xf32> to vector<24x128xf32>
      %235 = arith.mulf %232, %234 : vector<24x128xf32>
      %236 = arith.addf %203, %235 : vector<24x128xf32>
      %c57 = arith.constant 57 : index
      %c0_83 = arith.constant 0 : index
      %237 = vector.load %arg2[%c57, %c0_83] : memref<64x128xf32, #tpu.memory_space<vmem>>, vector<1x128xf32>
      %238 = vector.broadcast %237 : vector<1x128xf32> to vector<24x128xf32>
      %239 = arith.mulf %232, %238 : vector<24x128xf32>
      %240 = arith.addf %207, %239 : vector<24x128xf32>
      %c58 = arith.constant 58 : index
      %c0_84 = arith.constant 0 : index
      %241 = vector.load %arg2[%c58, %c0_84] : memref<64x128xf32, #tpu.memory_space<vmem>>, vector<1x128xf32>
      %242 = vector.broadcast %241 : vector<1x128xf32> to vector<24x128xf32>
      %243 = arith.mulf %232, %242 : vector<24x128xf32>
      %244 = arith.addf %211, %243 : vector<24x128xf32>
      %c59 = arith.constant 59 : index
      %c0_85 = arith.constant 0 : index
      %245 = vector.load %arg2[%c59, %c0_85] : memref<64x128xf32, #tpu.memory_space<vmem>>, vector<1x128xf32>
      %246 = vector.broadcast %245 : vector<1x128xf32> to vector<24x128xf32>
      %247 = arith.mulf %232, %246 : vector<24x128xf32>
      %248 = arith.addf %215, %247 : vector<24x128xf32>
      %c60 = arith.constant 60 : index
      %c0_86 = arith.constant 0 : index
      %249 = vector.load %arg2[%c60, %c0_86] : memref<64x128xf32, #tpu.memory_space<vmem>>, vector<1x128xf32>
      %250 = vector.broadcast %249 : vector<1x128xf32> to vector<24x128xf32>
      %251 = arith.mulf %232, %250 : vector<24x128xf32>
      %252 = arith.addf %219, %251 : vector<24x128xf32>
      %c61 = arith.constant 61 : index
      %c0_87 = arith.constant 0 : index
      %253 = vector.load %arg2[%c61, %c0_87] : memref<64x128xf32, #tpu.memory_space<vmem>>, vector<1x128xf32>
      %254 = vector.broadcast %253 : vector<1x128xf32> to vector<24x128xf32>
      %255 = arith.mulf %232, %254 : vector<24x128xf32>
      %256 = arith.addf %223, %255 : vector<24x128xf32>
      %c62 = arith.constant 62 : index
      %c0_88 = arith.constant 0 : index
      %257 = vector.load %arg2[%c62, %c0_88] : memref<64x128xf32, #tpu.memory_space<vmem>>, vector<1x128xf32>
      %258 = vector.broadcast %257 : vector<1x128xf32> to vector<24x128xf32>
      %259 = arith.mulf %232, %258 : vector<24x128xf32>
      %260 = arith.addf %227, %259 : vector<24x128xf32>
      %c63 = arith.constant 63 : index
      %c0_89 = arith.constant 0 : index
      %261 = vector.load %arg2[%c63, %c0_89] : memref<64x128xf32, #tpu.memory_space<vmem>>, vector<1x128xf32>
      %262 = vector.broadcast %261 : vector<1x128xf32> to vector<24x128xf32>
      %263 = arith.mulf %232, %262 : vector<24x128xf32>
      %264 = arith.addf %231, %263 : vector<24x128xf32>
      %c0_90 = arith.constant 0 : index
      %c0_91 = arith.constant 0 : index
      %265 = vector.load %arg3[%c0_90, %c0_91] : memref<1x128xf32, #tpu.memory_space<vmem>>, vector<1x128xf32>
      %266 = vector.broadcast %265 : vector<1x128xf32> to vector<24x128xf32>
      %267 = arith.addf %236, %266 : vector<24x128xf32>
      %c0_92 = arith.constant 0 : index
      %c0_93 = arith.constant 0 : index
      %268 = vector.load %arg6[%c0_92, %c0_93] : memref<24x128xf32, #tpu.memory_space<vmem>>, vector<24x128xf32>
      tpu.vector_store %arg6[%c0_92, %c0_93], %267 {strides = array<i32>} : memref<24x128xf32, #tpu.memory_space<vmem>>, vector<24x128xf32>,
      %c0_94 = arith.constant 0 : index
      %c0_95 = arith.constant 0 : index
      %269 = vector.load %arg6[%c0_94, %c0_95] : memref<24x128xf32, #tpu.memory_space<vmem>>, vector<24x127xf32>
      %270 = vector.extract_strided_slice %240 {offsets = [0, 1], sizes = [24, 127], strides = [1, 1]} : vector<24x128xf32> to vector<24x127xf32>
      %271 = arith.addf %269, %270 : vector<24x127xf32>
      %c0_96 = arith.constant 0 : index
      %c0_97 = arith.constant 0 : index
      %272 = vector.load %arg6[%c0_96, %c0_97] : memref<24x128xf32, #tpu.memory_space<vmem>>, vector<24x127xf32>
      tpu.vector_store %arg6[%c0_96, %c0_97], %271 {strides = array<i32>} : memref<24x128xf32, #tpu.memory_space<vmem>>, vector<24x127xf32>,
      %c0_98 = arith.constant 0 : index
      %c0_99 = arith.constant 0 : index
      %273 = vector.load %arg6[%c0_98, %c0_99] : memref<24x128xf32, #tpu.memory_space<vmem>>, vector<24x126xf32>
      %274 = vector.extract_strided_slice %244 {offsets = [0, 2], sizes = [24, 126], strides = [1, 1]} : vector<24x128xf32> to vector<24x126xf32>
      %275 = arith.addf %273, %274 : vector<24x126xf32>
      %c0_100 = arith.constant 0 : index
      %c0_101 = arith.constant 0 : index
      %276 = vector.load %arg6[%c0_100, %c0_101] : memref<24x128xf32, #tpu.memory_space<vmem>>, vector<24x126xf32>
      tpu.vector_store %arg6[%c0_100, %c0_101], %275 {strides = array<i32>} : memref<24x128xf32, #tpu.memory_space<vmem>>, vector<24x126xf32>,
      %c0_102 = arith.constant 0 : index
      %c0_103 = arith.constant 0 : index
      %277 = vector.load %arg6[%c0_102, %c0_103] : memref<24x128xf32, #tpu.memory_space<vmem>>, vector<24x125xf32>
      %278 = vector.extract_strided_slice %248 {offsets = [0, 3], sizes = [24, 125], strides = [1, 1]} : vector<24x128xf32> to vector<24x125xf32>
      %279 = arith.addf %277, %278 : vector<24x125xf32>
      %c0_104 = arith.constant 0 : index
      %c0_105 = arith.constant 0 : index
      %280 = vector.load %arg6[%c0_104, %c0_105] : memref<24x128xf32, #tpu.memory_space<vmem>>, vector<24x125xf32>
      tpu.vector_store %arg6[%c0_104, %c0_105], %279 {strides = array<i32>} : memref<24x128xf32, #tpu.memory_space<vmem>>, vector<24x125xf32>,
      %c0_106 = arith.constant 0 : index
      %c0_107 = arith.constant 0 : index
      %281 = vector.load %arg6[%c0_106, %c0_107] : memref<24x128xf32, #tpu.memory_space<vmem>>, vector<24x124xf32>
      %282 = vector.extract_strided_slice %252 {offsets = [0, 4], sizes = [24, 124], strides = [1, 1]} : vector<24x128xf32> to vector<24x124xf32>
      %283 = arith.addf %281, %282 : vector<24x124xf32>
      %c0_108 = arith.constant 0 : index
      %c0_109 = arith.constant 0 : index
      %284 = vector.load %arg6[%c0_108, %c0_109] : memref<24x128xf32, #tpu.memory_space<vmem>>, vector<24x124xf32>
      tpu.vector_store %arg6[%c0_108, %c0_109], %283 {strides = array<i32>} : memref<24x128xf32, #tpu.memory_space<vmem>>, vector<24x124xf32>,
      %c0_110 = arith.constant 0 : index
      %c0_111 = arith.constant 0 : index
      %285 = vector.load %arg6[%c0_110, %c0_111] : memref<24x128xf32, #tpu.memory_space<vmem>>, vector<24x123xf32>
      %286 = vector.extract_strided_slice %256 {offsets = [0, 5], sizes = [24, 123], strides = [1, 1]} : vector<24x128xf32> to vector<24x123xf32>
      %287 = arith.addf %285, %286 : vector<24x123xf32>
      %c0_112 = arith.constant 0 : index
      %c0_113 = arith.constant 0 : index
      %288 = vector.load %arg6[%c0_112, %c0_113] : memref<24x128xf32, #tpu.memory_space<vmem>>, vector<24x123xf32>
      tpu.vector_store %arg6[%c0_112, %c0_113], %287 {strides = array<i32>} : memref<24x128xf32, #tpu.memory_space<vmem>>, vector<24x123xf32>,
      %c0_114 = arith.constant 0 : index
      %c0_115 = arith.constant 0 : index
      %289 = vector.load %arg6[%c0_114, %c0_115] : memref<24x128xf32, #tpu.memory_space<vmem>>, vector<24x122xf32>
      %290 = vector.extract_strided_slice %260 {offsets = [0, 6], sizes = [24, 122], strides = [1, 1]} : vector<24x128xf32> to vector<24x122xf32>
      %291 = arith.addf %289, %290 : vector<24x122xf32>
      %c0_116 = arith.constant 0 : index
      %c0_117 = arith.constant 0 : index
      %292 = vector.load %arg6[%c0_116, %c0_117] : memref<24x128xf32, #tpu.memory_space<vmem>>, vector<24x122xf32>
      tpu.vector_store %arg6[%c0_116, %c0_117], %291 {strides = array<i32>} : memref<24x128xf32, #tpu.memory_space<vmem>>, vector<24x122xf32>,
      %c0_118 = arith.constant 0 : index
      %c0_119 = arith.constant 0 : index
      %293 = vector.load %arg6[%c0_118, %c0_119] : memref<24x128xf32, #tpu.memory_space<vmem>>, vector<24x121xf32>
      %294 = vector.extract_strided_slice %264 {offsets = [0, 7], sizes = [24, 121], strides = [1, 1]} : vector<24x128xf32> to vector<24x121xf32>
      %295 = arith.addf %293, %294 : vector<24x121xf32>
      %c0_120 = arith.constant 0 : index
      %c0_121 = arith.constant 0 : index
      %296 = vector.load %arg6[%c0_120, %c0_121] : memref<24x128xf32, #tpu.memory_space<vmem>>, vector<24x121xf32>
      tpu.vector_store %arg6[%c0_120, %c0_121], %295 {strides = array<i32>} : memref<24x128xf32, #tpu.memory_space<vmem>>, vector<24x121xf32>,
      %c0_122 = arith.constant 0 : index
      %c0_123 = arith.constant 0 : index
      %297 = vector.load %arg6[%c0_122, %c0_123] : memref<24x128xf32, #tpu.memory_space<vmem>>, vector<24x128xf32>
      %298 = arith.index_cast %arg7 : i32 to index
      %c0_124 = arith.constant 0 : index
      %c0_125 = arith.constant 0 : index
      %299 = vector.load %arg4[%298, %c0_124, %c0_125] : memref<2x24x128xf32, #tpu.memory_space<vmem>>, vector<1x24x128xf32>
      %300 = vector.shape_cast %299 : vector<1x24x128xf32> to vector<24x128xf32>
      %301 = vector.shape_cast %297 : vector<24x128xf32> to vector<1x24x128xf32>
      tpu.vector_store %arg4[%298, %c0_124, %c0_125], %301 {strides = array<i32>} : memref<2x24x128xf32, #tpu.memory_space<vmem>>, vector<1x24x128xf32>,
    }
    %c2_i32_1 = arith.constant 2 : i32
    return
  }
  func.func @transform_0(%arg0: i32) -> (i32, i32, i32) {
    %c0_i32 = arith.constant 0 : i32
    %c0_i32_0 = arith.constant 0 : i32
    %c0_i32_1 = arith.constant 0 : i32
    %c0_i32_2 = arith.constant 0 : i32
    return %c0_i32, %c0_i32_0, %c0_i32_1 : i32, i32, i32
  }
  func.func @transform_1(%arg0: i32) -> (i32, i32) {
    %c0_i32 = arith.constant 0 : i32
    %c0_i32_0 = arith.constant 0 : i32
    %c0_i32_1 = arith.constant 0 : i32
    return %c0_i32, %c0_i32_0 : i32, i32
  }
  func.func @transform_2(%arg0: i32) -> (i32, i32) {
    %c0_i32 = arith.constant 0 : i32
    %c0_i32_0 = arith.constant 0 : i32
    %c0_i32_1 = arith.constant 0 : i32
    return %c0_i32, %c0_i32_0 : i32, i32
  }
  func.func @transform_3(%arg0: i32) -> (i32, i32, i32) {
    %c0_i32 = arith.constant 0 : i32
    %c0_i32_0 = arith.constant 0 : i32
    %c0_i32_1 = arith.constant 0 : i32
    %c0_i32_2 = arith.constant 0 : i32
    return %c0_i32, %c0_i32_0, %c0_i32_1 : i32, i32, i32
  }
}

</mosaic_0001>

<llo_original>
// kernel: squeeze.1
$region0: #{squeeze.1}
  %s0 = inlined_call_operand.vmem [shape: f32[1,3,8,8], index: 0, kind: input, shape index: {}]
  %s1 = inlined_call_operand.vmem [shape: f32[3,64], index: 1, kind: output, shape index: {}]
  $region1: #{squeeze.1} parent=0
    #allocation0 [shape = 'u8[4096]{0}', space=vmem, size = 0x1000, scoped, tag = 'scoped mem for output reshape']
    %v2 = vld [vmem:[%s0] ss:$8 sm:$0x7]
    %vm3 = vcmask 64512
    %4 = vst.msk [vmem:[#allocation0] sm:$0x7] %vm3, %v2
    %s5 = scalar_lea.vmem %s0, 7
    %v6 = vld [vmem:[%s5] ss:$8 sm:$0x7]
    %7 = vrot.lane.b32.xlu0 %v6, 56
    %v8 = vpop.permute.xlu0 %7
    %vm9 = vcmask 523712
    %10 = vst.msk [vmem:[#allocation0] sm:$0x7] %vm9, %v8
    %s11 = scalar_lea.vmem %s0, 6
    %v12 = vld [vmem:[%s11] ss:$8 sm:$0x7]
    %13 = vrot.lane.b32.xlu0 %v12, 48
    %v14 = vpop.permute.xlu0 %13
    %vm15 = vcmask 458112
    %16 = vst.msk [vmem:[#allocation0] sm:$0x7] %vm15, %v14
    %s17 = scalar_lea.vmem %s0, 5
    %v18 = vld [vmem:[%s17] ss:$8 sm:$0x7]
    %19 = vrot.lane.b32.xlu0 %v18, 40
    %v20 = vpop.permute.xlu0 %19
    %vm21 = vcmask 392512
    %22 = vst.msk [vmem:[#allocation0] sm:$0x7] %vm21, %v20
    %s23 = scalar_lea.vmem %s0, 4
    %v24 = vld [vmem:[%s23] ss:$8 sm:$0x7]
    %25 = vrot.lane.b32.xlu0 %v24, 32
    %v26 = vpop.permute.xlu0 %25
    %vm27 = vcmask 326912
    %28 = vst.msk [vmem:[#allocation0] sm:$0x7] %vm27, %v26
    %s29 = scalar_lea.vmem %s0, 3
    %v30 = vld [vmem:[%s29] ss:$8 sm:$0x7]
    %31 = vrot.lane.b32.xlu0 %v30, 24
    %v32 = vpop.permute.xlu0 %31
    %vm33 = vcmask 261312
    %34 = vst.msk [vmem:[#allocation0] sm:$0x7] %vm33, %v32
    %s35 = scalar_lea.vmem %s0, 2
    %v36 = vld [vmem:[%s35] ss:$8 sm:$0x7]
    %37 = vrot.lane.b32.xlu0 %v36, 16
    %v38 = vpop.permute.xlu0 %37
    %vm39 = vcmask 195712
    %40 = vst.msk [vmem:[#allocation0] sm:$0x7] %vm39, %v38
    %s41 = scalar_lea.vmem %s0, 1
    %v42 = vld [vmem:[%s41] ss:$8 sm:$0x7]
    %43 = vrot.lane.b32.xlu0 %v42, 8
    %v44 = vpop.permute.xlu0 %43
    %vm45 = vcmask 130112
    %46 = vst.msk [vmem:[#allocation0] sm:$0x7] %vm45, %v44
    %s48 = sshllo.u32 0, 4
    %v50 = vld [vmem:[#allocation0] sm:%s48]
    %s51 = sshllo.u32 0, 4
    %52 = vst [vmem:[%s1] sm:%s51] %v50

// kernel: conv_transpose2d.1
$region0: #{conv_transpose2d.1}
  #allocation0 [shape = 'u32[]', space=smem, size = 0x4, offset = 0x4, fixed_abs, tag = 'smem constant byte address 0x4 - core index']
  #allocation1 [shape = 'u32[144,128]{1,0:T(1,128)}', space=vmem, size = 0x12000, scoped, tag = 'internal scratch']
  #allocation2 [shape = 'f32[32,128]{1,0:T(8,128)}', space=vmem, size = 0x4000, scoped, tag = 'scratch operand']
  #allocation3 [shape = 'f32[24,128]{1,0:T(8,128)}', space=vmem, size = 0x3000, scoped, tag = 'scratch operand']
  %s0 = inlined_call_operand.vmem [shape: f32[2,16,16], index: 0, kind: input, shape index: {}]
  %s1 = inlined_call_operand.vmem [shape: f32[64,128], index: 1, kind: input, shape index: {}]
  %s2 = inlined_call_operand.vmem [shape: f32[1,128], index: 2, kind: input, shape index: {}]
  %s3 = inlined_call_operand.vmem [shape: f32[2,24,128], index: 3, kind: output, shape index: {}]
  %s4 = sld [smem:[#allocation0]]
  $region29: #{conv_transpose2d.1} parent=0
    _
  %s6 = ssub.s32 1, %s4
  %s7 = scalar_select 0, %s6, %s4
  // Predicated region
  $region2: #{conv_transpose2d.1} parent=0 // pred_check
    _
  $region3: #{conv_transpose2d.1} parent=0 // pred_check_branch
    %9 = sbr.rel (0) target = $region5
  $region4: #{conv_transpose2d.1} parent=0 // pred_region
    _
  $region5: #{conv_transpose2d.1} parent=0 // pred_fallthru
    _
  // Predicated region
  $region6: #{conv_transpose2d.1} parent=0 // pred_check
    _
  $region7: #{conv_transpose2d.1} parent=0 // pred_check_branch
    %11 = sbr.rel (0) target = $region9
  $region8: #{conv_transpose2d.1} parent=0 // pred_region
    _
  $region9: #{conv_transpose2d.1} parent=0 // pred_fallthru
    _
  // Predicated region
  $region10: #{conv_transpose2d.1} parent=0 // pred_check
    _
  $region11: #{conv_transpose2d.1} parent=0 // pred_check_branch
    %13 = sbr.rel (0) target = $region13
  $region12: #{conv_transpose2d.1} parent=0 // pred_region
    _
  $region13: #{conv_transpose2d.1} parent=0 // pred_fallthru
    _
  %14 = vst [vmem:[#allocation2] sm:$0xff] 0.0
  %15 = vst [vmem:[#allocation2 + $0x8] sm:$0xff] 0.0
  %16 = vst [vmem:[#allocation2 + $0x10] sm:$0xff] 0.0
  %17 = vst [vmem:[#allocation2 + $0x18] sm:$0xff] 0.0
  loop: start=0, step=1, limit=2
  $region14: #{conv_transpose2d.1} parent=0 // loop_pre_header
    _
  $region15: #{conv_transpose2d.1} parent=0 // loop_header
    %s19 = sphi 0, %s23
    %p20 = scmp.ge.s32.totalorder %s19, 2
  $region16: #{conv_transpose2d.1} parent=0 // loop_header_branch
    %22 = sbr.rel (%p20) target = $region20
  $region17: #{conv_transpose2d.1} parent=0 // loop_body
    %s24 = smul.u32 %s19, 16
    %s25 = scalar_lea.vmem %s0, %s24
    %v26 = vld [vmem:[%s25] sm:$0xff]
    %v27 = vld [vmem:[%s25 + $0x8] sm:$0xff]
    %30 = vrot.lane.b32.xlu0 %v26, 7
    %v31 = vpop.permute.xlu0 %30
    %32 = vrot.lane.b32.xlu0 %v27, 7
    %v33 = vpop.permute.xlu0 %32
    %vm36 = vcmask 187448
    %37 = vst.msk [vmem:[#allocation2 + $0x7] sm:$0xff] %vm36, %v31
    %38 = vst.msk [vmem:[#allocation2 + $0xf] sm:$0xff] %vm36, %v33
    %39 = vrot.lane.b32.xlu0 %v26, 50
    %v40 = vpop.permute.xlu0 %39
    %41 = vrot.lane.b32.xlu0 %v27, 50
    %v42 = vpop.permute.xlu0 %41
    %vm45 = vcmask 540048
    %46 = vst.msk [vmem:[#allocation2 + $0x7] sm:$0xff] %vm45, %v40
    %47 = vst.msk [vmem:[#allocation2 + $0xf] sm:$0xff] %vm45, %v42
    %48 = vrot.lane.b32.xlu0 %v26, 93
    %v49 = vpop.permute.xlu0 %48
    %50 = vrot.lane.b32.xlu0 %v27, 93
    %v51 = vpop.permute.xlu0 %50
    %vm54 = vcmask 892648
    %55 = vst.msk [vmem:[#allocation2 + $0x7] sm:$0xff] %vm54, %v49
    %56 = vst.msk [vmem:[#allocation2 + $0xf] sm:$0xff] %vm54, %v51
    %v57 = vld [vmem:[#allocation2] sm:$0xff]
    %v58 = vld [vmem:[#allocation2 + $0x8] sm:$0xff]
    %v59 = vld [vmem:[#allocation2 + $0x10] sm:$0xff]
    %v60 = vld [vmem:[%s1] sm:$0x1]
    %v61 = vlaneseq
    %v62 = vshrl.u32 %v61, 7
    %v63 = vsub.s32 0, %v62
    %v64 = vrot.slane %v60, %v63
    %v65 = vmul.f32 %v57, %v64
    %v66 = vmul.f32 %v58, %v64
    %v67 = vmul.f32 %v59, %v64
    %v68 = vld [vmem:[%s1 + $0x1] sm:$0x1]
    %v69 = vlaneseq
    %v70 = vshrl.u32 %v69, 7
    %v71 = vsub.s32 0, %v70
    %v72 = vrot.slane %v68, %v71
    %v73 = vmul.f32 %v57, %v72
    %v74 = vmul.f32 %v58, %v72
    %v75 = vmul.f32 %v59, %v72
    %v76 = vld [vmem:[%s1 + $0x2] sm:$0x1]
    %v77 = vlaneseq
    %v78 = vshrl.u32 %v77, 7
    %v79 = vsub.s32 0, %v78
    %v80 = vrot.slane %v76, %v79
    %v81 = vmul.f32 %v57, %v80
    %v82 = vmul.f32 %v58, %v80
    %v83 = vmul.f32 %v59, %v80
    %v84 = vld [vmem:[%s1 + $0x3] sm:$0x1]
    %v85 = vlaneseq
    %v86 = vshrl.u32 %v85, 7
    %v87 = vsub.s32 0, %v86
    %v88 = vrot.slane %v84, %v87
    %v89 = vmul.f32 %v57, %v88
    %v90 = vmul.f32 %v58, %v88
    %v91 = vmul.f32 %v59, %v88
    %v92 = vld [vmem:[%s1 + $0x4] sm:$0x1]
    %v93 = vlaneseq
    %v94 = vshrl.u32 %v93, 7
    %v95 = vsub.s32 0, %v94
    %v96 = vrot.slane %v92, %v95
    %v97 = vmul.f32 %v57, %v96
    %v98 = vmul.f32 %v58, %v96
    %v99 = vmul.f32 %v59, %v96
    %v100 = vld [vmem:[%s1 + $0x5] sm:$0x1]
    %v101 = vlaneseq
    %v102 = vshrl.u32 %v101, 7
    %v103 = vsub.s32 0, %v102
    %v104 = vrot.slane %v100, %v103
    %v105 = vmul.f32 %v57, %v104
    %v106 = vmul.f32 %v58, %v104
    %v107 = vmul.f32 %v59, %v104
    %v108 = vld [vmem:[%s1 + $0x6] sm:$0x1]
    %v109 = vlaneseq
    %v110 = vshrl.u32 %v109, 7
    %v111 = vsub.s32 0, %v110
    %v112 = vrot.slane %v108, %v111
    %v113 = vmul.f32 %v57, %v112
    %v114 = vmul.f32 %v58, %v112
    %v115 = vmul.f32 %v59, %v112
    %v116 = vld [vmem:[%s1 + $0x7] sm:$0x1]
    %v117 = vlaneseq
    %v118 = vshrl.u32 %v117, 7
    %v119 = vsub.s32 0, %v118
    %v120 = vrot.slane %v116, %v119
    %v121 = vmul.f32 %v57, %v120
    %v122 = vmul.f32 %v58, %v120
    %v123 = vmul.f32 %v59, %v120
    %v124 = vld [vmem:[#allocation2 + $0x1] sm:$0xff]
    %v125 = vld [vmem:[#allocation2 + $0x9] sm:$0xff]
    %v126 = vld [vmem:[#allocation2 + $0x11] sm:$0xff]
    %v127 = vld [vmem:[%s1 + $0x8] sm:$0x1]
    %v128 = vlaneseq
    %v129 = vshrl.u32 %v128, 7
    %v130 = vsub.s32 0, %v129
    %v131 = vrot.slane %v127, %v130
    %v132 = vmul.f32 %v124, %v131
    %v133 = vmul.f32 %v125, %v131
    %v134 = vmul.f32 %v126, %v131
    %v135 = vadd.f32 %v65, %v132
    %v136 = vadd.f32 %v66, %v133
    %v137 = vadd.f32 %v67, %v134
    %v138 = vld [vmem:[%s1 + $0x9] sm:$0x1]
    %v139 = vlaneseq
    %v140 = vshrl.u32 %v139, 7
    %v141 = vsub.s32 0, %v140
    %v142 = vrot.slane %v138, %v141
    %v143 = vmul.f32 %v124, %v142
    %v144 = vmul.f32 %v125, %v142
    %v145 = vmul.f32 %v126, %v142
    %v146 = vadd.f32 %v73, %v143
    %v147 = vadd.f32 %v74, %v144
    %v148 = vadd.f32 %v75, %v145
    %v149 = vld [vmem:[%s1 + $0xa] sm:$0x1]
    %v150 = vlaneseq
    %v151 = vshrl.u32 %v150, 7
    %v152 = vsub.s32 0, %v151
    %v153 = vrot.slane %v149, %v152
    %v154 = vmul.f32 %v124, %v153
    %v155 = vmul.f32 %v125, %v153
    %v156 = vmul.f32 %v126, %v153
    %v157 = vadd.f32 %v81, %v154
    %v158 = vadd.f32 %v82, %v155
    %v159 = vadd.f32 %v83, %v156
    %v160 = vld [vmem:[%s1 + $0xb] sm:$0x1]
    %v161 = vlaneseq
    %v162 = vshrl.u32 %v161, 7
    %v163 = vsub.s32 0, %v162
    %v164 = vrot.slane %v160, %v163
    %v165 = vmul.f32 %v124, %v164
    %v166 = vmul.f32 %v125, %v164
    %v167 = vmul.f32 %v126, %v164
    %v168 = vadd.f32 %v89, %v165
    %v169 = vadd.f32 %v90, %v166
    %v170 = vadd.f32 %v91, %v167
    %v171 = vld [vmem:[%s1 + $0xc] sm:$0x1]
    %v172 = vlaneseq
    %v173 = vshrl.u32 %v172, 7
    %v174 = vsub.s32 0, %v173
    %v175 = vrot.slane %v171, %v174
    %v176 = vmul.f32 %v124, %v175
    %v177 = vmul.f32 %v125, %v175
    %v178 = vmul.f32 %v126, %v175
    %v179 = vadd.f32 %v97, %v176
    %v180 = vadd.f32 %v98, %v177
    %v181 = vadd.f32 %v99, %v178
    %v182 = vld [vmem:[%s1 + $0xd] sm:$0x1]
    %v183 = vlaneseq
    %v184 = vshrl.u32 %v183, 7
    %v185 = vsub.s32 0, %v184
    %v186 = vrot.slane %v182, %v185
    %v187 = vmul.f32 %v124, %v186
    %v188 = vmul.f32 %v125, %v186
    %v189 = vmul.f32 %v126, %v186
    %v190 = vadd.f32 %v105, %v187
    %v191 = vadd.f32 %v106, %v188
    %v192 = vadd.f32 %v107, %v189
    %v193 = vld [vmem:[%s1 + $0xe] sm:$0x1]
    %v194 = vlaneseq
    %v195 = vshrl.u32 %v194, 7
    %v196 = vsub.s32 0, %v195
    %v197 = vrot.slane %v193, %v196
    %v198 = vmul.f32 %v124, %v197
    %v199 = vmul.f32 %v125, %v197
    %v200 = vmul.f32 %v126, %v197
    %v201 = vadd.f32 %v113, %v198
    %v202 = vadd.f32 %v114, %v199
    %v203 = vadd.f32 %v115, %v200
    %v204 = vld [vmem:[%s1 + $0xf] sm:$0x1]
    %v205 = vlaneseq
    %v206 = vshrl.u32 %v205, 7
    %v207 = vsub.s32 0, %v206
    %v208 = vrot.slane %v204, %v207
    %v209 = vmul.f32 %v124, %v208
    %v210 = vmul.f32 %v125, %v208
    %v211 = vmul.f32 %v126, %v208
    %v212 = vadd.f32 %v121, %v209
    %v213 = vadd.f32 %v122, %v210
    %v214 = vadd.f32 %v123, %v211
    %v215 = vld [vmem:[#allocation2 + $0x2] sm:$0xff]
    %v216 = vld [vmem:[#allocation2 + $0xa] sm:$0xff]
    %v217 = vld [vmem:[#allocation2 + $0x12] sm:$0xff]
    %v218 = vld [vmem:[%s1 + $0x10] sm:$0x1]
    %v219 = vlaneseq
    %v220 = vshrl.u32 %v219, 7
    %v221 = vsub.s32 0, %v220
    %v222 = vrot.slane %v218, %v221
    %v223 = vmul.f32 %v215, %v222
    %v224 = vmul.f32 %v216, %v222
    %v225 = vmul.f32 %v217, %v222
    %v226 = vadd.f32 %v135, %v223
    %v227 = vadd.f32 %v136, %v224
    %v228 = vadd.f32 %v137, %v225
    %v229 = vld [vmem:[%s1 + $0x11] sm:$0x1]
    %v230 = vlaneseq
    %v231 = vshrl.u32 %v230, 7
    %v232 = vsub.s32 0, %v231
    %v233 = vrot.slane %v229, %v232
    %v234 = vmul.f32 %v215, %v233
    %v235 = vmul.f32 %v216, %v233
    %v236 = vmul.f32 %v217, %v233
    %v237 = vadd.f32 %v146, %v234
    %v238 = vadd.f32 %v147, %v235
    %v239 = vadd.f32 %v148, %v236
    %v240 = vld [vmem:[%s1 + $0x12] sm:$0x1]
    %v241 = vlaneseq
    %v242 = vshrl.u32 %v241, 7
    %v243 = vsub.s32 0, %v242
    %v244 = vrot.slane %v240, %v243
    %v245 = vmul.f32 %v215, %v244
    %v246 = vmul.f32 %v216, %v244
    %v247 = vmul.f32 %v217, %v244
    %v248 = vadd.f32 %v157, %v245
    %v249 = vadd.f32 %v158, %v246
    %v250 = vadd.f32 %v159, %v247
    %v251 = vld [vmem:[%s1 + $0x13] sm:$0x1]
    %v252 = vlaneseq
    %v253 = vshrl.u32 %v252, 7
    %v254 = vsub.s32 0, %v253
    %v255 = vrot.slane %v251, %v254
    %v256 = vmul.f32 %v215, %v255
    %v257 = vmul.f32 %v216, %v255
    %v258 = vmul.f32 %v217, %v255
    %v259 = vadd.f32 %v168, %v256
    %v260 = vadd.f32 %v169, %v257
    %v261 = vadd.f32 %v170, %v258
    %v262 = vld [vmem:[%s1 + $0x14] sm:$0x1]
    %v263 = vlaneseq
    %v264 = vshrl.u32 %v263, 7
    %v265 = vsub.s32 0, %v264
    %v266 = vrot.slane %v262, %v265
    %v267 = vmul.f32 %v215, %v266
    %v268 = vmul.f32 %v216, %v266
    %v269 = vmul.f32 %v217, %v266
    %v270 = vadd.f32 %v179, %v267
    %v271 = vadd.f32 %v180, %v268
    %v272 = vadd.f32 %v181, %v269
    %v273 = vld [vmem:[%s1 + $0x15] sm:$0x1]
    %v274 = vlaneseq
    %v275 = vshrl.u32 %v274, 7
    %v276 = vsub.s32 0, %v275
    %v277 = vrot.slane %v273, %v276
    %v278 = vmul.f32 %v215, %v277
    %v279 = vmul.f32 %v216, %v277
    %v280 = vmul.f32 %v217, %v277
    %v281 = vadd.f32 %v190, %v278
    %v282 = vadd.f32 %v191, %v279
    %v283 = vadd.f32 %v192, %v280
    %v284 = vld [vmem:[%s1 + $0x16] sm:$0x1]
    %v285 = vlaneseq
    %v286 = vshrl.u32 %v285, 7
    %v287 = vsub.s32 0, %v286
    %v288 = vrot.slane %v284, %v287
    %v289 = vmul.f32 %v215, %v288
    %v290 = vmul.f32 %v216, %v288
    %v291 = vmul.f32 %v217, %v288
    %v292 = vadd.f32 %v201, %v289
    %v293 = vadd.f32 %v202, %v290
    %v294 = vadd.f32 %v203, %v291
    %v295 = vld [vmem:[%s1 + $0x17] sm:$0x1]
    %v296 = vlaneseq
    %v297 = vshrl.u32 %v296, 7
    %v298 = vsub.s32 0, %v297
    %v299 = vrot.slane %v295, %v298
    %v300 = vmul.f32 %v215, %v299
    %v301 = vmul.f32 %v216, %v299
    %v302 = vmul.f32 %v217, %v299
    %v303 = vadd.f32 %v212, %v300
    %v304 = vadd.f32 %v213, %v301
    %v305 = vadd.f32 %v214, %v302
    %v306 = vld [vmem:[#allocation2 + $0x3] sm:$0xff]
    %v307 = vld [vmem:[#allocation2 + $0xb] sm:$0xff]
    %v308 = vld [vmem:[#allocation2 + $0x13] sm:$0xff]
    %v309 = vld [vmem:[%s1 + $0x18] sm:$0x1]
    %v310 = vlaneseq
    %v311 = vshrl.u32 %v310, 7
    %v312 = vsub.s32 0, %v311
    %v313 = vrot.slane %v309, %v312
    %v314 = vmul.f32 %v306, %v313
    %v315 = vmul.f32 %v307, %v313
    %v316 = vmul.f32 %v308, %v313
    %v317 = vadd.f32 %v226, %v314
    %v318 = vadd.f32 %v227, %v315
    %v319 = vadd.f32 %v228, %v316
    %v320 = vld [vmem:[%s1 + $0x19] sm:$0x1]
    %v321 = vlaneseq
    %v322 = vshrl.u32 %v321, 7
    %v323 = vsub.s32 0, %v322
    %v324 = vrot.slane %v320, %v323
    %v325 = vmul.f32 %v306, %v324
    %v326 = vmul.f32 %v307, %v324
    %v327 = vmul.f32 %v308, %v324
    %v328 = vadd.f32 %v237, %v325
    %v329 = vadd.f32 %v238, %v326
    %v330 = vadd.f32 %v239, %v327
    %v331 = vld [vmem:[%s1 + $0x1a] sm:$0x1]
    %v332 = vlaneseq
    %v333 = vshrl.u32 %v332, 7
    %v334 = vsub.s32 0, %v333
    %v335 = vrot.slane %v331, %v334
    %v336 = vmul.f32 %v306, %v335
    %v337 = vmul.f32 %v307, %v335
    %v338 = vmul.f32 %v308, %v335
    %v339 = vadd.f32 %v248, %v336
    %v340 = vadd.f32 %v249, %v337
    %v341 = vadd.f32 %v250, %v338
    %v342 = vld [vmem:[%s1 + $0x1b] sm:$0x1]
    %v343 = vlaneseq
    %v344 = vshrl.u32 %v343, 7
    %v345 = vsub.s32 0, %v344
    %v346 = vrot.slane %v342, %v345
    %v347 = vmul.f32 %v306, %v346
    %v348 = vmul.f32 %v307, %v346
    %v349 = vmul.f32 %v308, %v346
    %v350 = vadd.f32 %v259, %v347
    %v351 = vadd.f32 %v260, %v348
    %v352 = vadd.f32 %v261, %v349
    %v353 = vld [vmem:[%s1 + $0x1c] sm:$0x1]
    %v354 = vlaneseq
    %v355 = vshrl.u32 %v354, 7
    %v356 = vsub.s32 0, %v355
    %v357 = vrot.slane %v353, %v356
    %v358 = vmul.f32 %v306, %v357
    %v359 = vmul.f32 %v307, %v357
    %v360 = vmul.f32 %v308, %v357
    %v361 = vadd.f32 %v270, %v358
    %v362 = vadd.f32 %v271, %v359
    %v363 = vadd.f32 %v272, %v360
    %v364 = vld [vmem:[%s1 + $0x1d] sm:$0x1]
    %v365 = vlaneseq
    %v366 = vshrl.u32 %v365, 7
    %v367 = vsub.s32 0, %v366
    %v368 = vrot.slane %v364, %v367
    %v369 = vmul.f32 %v306, %v368
    %v370 = vmul.f32 %v307, %v368
    %v371 = vmul.f32 %v308, %v368
    %v372 = vadd.f32 %v281, %v369
    %v373 = vadd.f32 %v282, %v370
    %v374 = vadd.f32 %v283, %v371
    %v375 = vld [vmem:[%s1 + $0x1e] sm:$0x1]
    %v376 = vlaneseq
    %v377 = vshrl.u32 %v376, 7
    %v378 = vsub.s32 0, %v377
    %v379 = vrot.slane %v375, %v378
    %v380 = vmul.f32 %v306, %v379
    %v381 = vmul.f32 %v307, %v379
    %v382 = vmul.f32 %v308, %v379
    %v383 = vadd.f32 %v292, %v380
    %v384 = vadd.f32 %v293, %v381
    %v385 = vadd.f32 %v294, %v382
    %v386 = vld [vmem:[%s1 + $0x1f] sm:$0x1]
    %v387 = vlaneseq
    %v388 = vshrl.u32 %v387, 7
    %v389 = vsub.s32 0, %v388
    %v390 = vrot.slane %v386, %v389
    %v391 = vmul.f32 %v306, %v390
    %v392 = vmul.f32 %v307, %v390
    %v393 = vmul.f32 %v308, %v390
    %v394 = vadd.f32 %v303, %v391
    %v395 = vadd.f32 %v304, %v392
    %v396 = vadd.f32 %v305, %v393
    %v397 = vld [vmem:[#allocation2 + $0x4] sm:$0xff]
    %v398 = vld [vmem:[#allocation2 + $0xc] sm:$0xff]
    %v399 = vld [vmem:[#allocation2 + $0x14] sm:$0xff]
    %v400 = vld [vmem:[%s1 + $0x20] sm:$0x1]
    %v401 = vlaneseq
    %v402 = vshrl.u32 %v401, 7
    %v403 = vsub.s32 0, %v402
    %v404 = vrot.slane %v400, %v403
    %v405 = vmul.f32 %v397, %v404
    %v406 = vmul.f32 %v398, %v404
    %v407 = vmul.f32 %v399, %v404
    %v408 = vadd.f32 %v317, %v405
    %v409 = vadd.f32 %v318, %v406
    %v410 = vadd.f32 %v319, %v407
    %v411 = vld [vmem:[%s1 + $0x21] sm:$0x1]
    %v412 = vlaneseq
    %v413 = vshrl.u32 %v412, 7
    %v414 = vsub.s32 0, %v413
    %v415 = vrot.slane %v411, %v414
    %v416 = vmul.f32 %v397, %v415
    %v417 = vmul.f32 %v398, %v415
    %v418 = vmul.f32 %v399, %v415
    %v419 = vadd.f32 %v328, %v416
    %v420 = vadd.f32 %v329, %v417
    %v421 = vadd.f32 %v330, %v418
    %v422 = vld [vmem:[%s1 + $0x22] sm:$0x1]
    %v423 = vlaneseq
    %v424 = vshrl.u32 %v423, 7
    %v425 = vsub.s32 0, %v424
    %v426 = vrot.slane %v422, %v425
    %v427 = vmul.f32 %v397, %v426
    %v428 = vmul.f32 %v398, %v426
    %v429 = vmul.f32 %v399, %v426
    %v430 = vadd.f32 %v339, %v427
    %v431 = vadd.f32 %v340, %v428
    %v432 = vadd.f32 %v341, %v429
    %v433 = vld [vmem:[%s1 + $0x23] sm:$0x1]
    %v434 = vlaneseq
    %v435 = vshrl.u32 %v434, 7
    %v436 = vsub.s32 0, %v435
    %v437 = vrot.slane %v433, %v436
    %v438 = vmul.f32 %v397, %v437
    %v439 = vmul.f32 %v398, %v437
    %v440 = vmul.f32 %v399, %v437
    %v441 = vadd.f32 %v350, %v438
    %v442 = vadd.f32 %v351, %v439
    %v443 = vadd.f32 %v352, %v440
    %v444 = vld [vmem:[%s1 + $0x24] sm:$0x1]
    %v445 = vlaneseq
    %v446 = vshrl.u32 %v445, 7
    %v447 = vsub.s32 0, %v446
    %v448 = vrot.slane %v444, %v447
    %v449 = vmul.f32 %v397, %v448
    %v450 = vmul.f32 %v398, %v448
    %v451 = vmul.f32 %v399, %v448
    %v452 = vadd.f32 %v361, %v449
    %v453 = vadd.f32 %v362, %v450
    %v454 = vadd.f32 %v363, %v451
    %v455 = vld [vmem:[%s1 + $0x25] sm:$0x1]
    %v456 = vlaneseq
    %v457 = vshrl.u32 %v456, 7
    %v458 = vsub.s32 0, %v457
    %v459 = vrot.slane %v455, %v458
    %v460 = vmul.f32 %v397, %v459
    %v461 = vmul.f32 %v398, %v459
    %v462 = vmul.f32 %v399, %v459
    %v463 = vadd.f32 %v372, %v460
    %v464 = vadd.f32 %v373, %v461
    %v465 = vadd.f32 %v374, %v462
    %v466 = vld [vmem:[%s1 + $0x26] sm:$0x1]
    %v467 = vlaneseq
    %v468 = vshrl.u32 %v467, 7
    %v469 = vsub.s32 0, %v468
    %v470 = vrot.slane %v466, %v469
    %v471 = vmul.f32 %v397, %v470
    %v472 = vmul.f32 %v398, %v470
    %v473 = vmul.f32 %v399, %v470
    %v474 = vadd.f32 %v383, %v471
    %v475 = vadd.f32 %v384, %v472
    %v476 = vadd.f32 %v385, %v473
    %v477 = vld [vmem:[%s1 + $0x27] sm:$0x1]
    %v478 = vlaneseq
    %v479 = vshrl.u32 %v478, 7
    %v480 = vsub.s32 0, %v479
    %v481 = vrot.slane %v477, %v480
    %v482 = vmul.f32 %v397, %v481
    %v483 = vmul.f32 %v398, %v481
    %v484 = vmul.f32 %v399, %v481
    %v485 = vadd.f32 %v394, %v482
    %v486 = vadd.f32 %v395, %v483
    %v487 = vadd.f32 %v396, %v484
    %v488 = vld [vmem:[#allocation2 + $0x5] sm:$0xff]
    %v489 = vld [vmem:[#allocation2 + $0xd] sm:$0xff]
    %v490 = vld [vmem:[#allocation2 + $0x15] sm:$0xff]
    %v491 = vld [vmem:[%s1 + $0x28] sm:$0x1]
    %v492 = vlaneseq
    %v493 = vshrl.u32 %v492, 7
    %v494 = vsub.s32 0, %v493
    %v495 = vrot.slane %v491, %v494
    %v496 = vmul.f32 %v488, %v495
    %v497 = vmul.f32 %v489, %v495
    %v498 = vmul.f32 %v490, %v495
    %v499 = vadd.f32 %v408, %v496
    %v500 = vadd.f32 %v409, %v497
    %v501 = vadd.f32 %v410, %v498
    %v502 = vld [vmem:[%s1 + $0x29] sm:$0x1]
    %v503 = vlaneseq
    %v504 = vshrl.u32 %v503, 7
    %v505 = vsub.s32 0, %v504
    %v506 = vrot.slane %v502, %v505
    %v507 = vmul.f32 %v488, %v506
    %v508 = vmul.f32 %v489, %v506
    %v509 = vmul.f32 %v490, %v506
    %v510 = vadd.f32 %v419, %v507
    %v511 = vadd.f32 %v420, %v508
    %v512 = vadd.f32 %v421, %v509
    %v513 = vld [vmem:[%s1 + $0x2a] sm:$0x1]
    %v514 = vlaneseq
    %v515 = vshrl.u32 %v514, 7
    %v516 = vsub.s32 0, %v515
    %v517 = vrot.slane %v513, %v516
    %v518 = vmul.f32 %v488, %v517
    %v519 = vmul.f32 %v489, %v517
    %v520 = vmul.f32 %v490, %v517
    %v521 = vadd.f32 %v430, %v518
    %v522 = vadd.f32 %v431, %v519
    %v523 = vadd.f32 %v432, %v520
    %v524 = vld [vmem:[%s1 + $0x2b] sm:$0x1]
    %v525 = vlaneseq
    %v526 = vshrl.u32 %v525, 7
    %v527 = vsub.s32 0, %v526
    %v528 = vrot.slane %v524, %v527
    %v529 = vmul.f32 %v488, %v528
    %v530 = vmul.f32 %v489, %v528
    %v531 = vmul.f32 %v490, %v528
    %v532 = vadd.f32 %v441, %v529
    %v533 = vadd.f32 %v442, %v530
    %v534 = vadd.f32 %v443, %v531
    %v535 = vld [vmem:[%s1 + $0x2c] sm:$0x1]
    %v536 = vlaneseq
    %v537 = vshrl.u32 %v536, 7
    %v538 = vsub.s32 0, %v537
    %v539 = vrot.slane %v535, %v538
    %v540 = vmul.f32 %v488, %v539
    %v541 = vmul.f32 %v489, %v539
    %v542 = vmul.f32 %v490, %v539
    %v543 = vadd.f32 %v452, %v540
    %v544 = vadd.f32 %v453, %v541
    %v545 = vadd.f32 %v454, %v542
    %v546 = vld [vmem:[%s1 + $0x2d] sm:$0x1]
    %v547 = vlaneseq
    %v548 = vshrl.u32 %v547, 7
    %v549 = vsub.s32 0, %v548
    %v550 = vrot.slane %v546, %v549
    %v551 = vmul.f32 %v488, %v550
    %v552 = vmul.f32 %v489, %v550
    %v553 = vmul.f32 %v490, %v550
    %v554 = vadd.f32 %v463, %v551
    %v555 = vadd.f32 %v464, %v552
    %v556 = vadd.f32 %v465, %v553
    %v557 = vld [vmem:[%s1 + $0x2e] sm:$0x1]
    %v558 = vlaneseq
    %v559 = vshrl.u32 %v558, 7
    %v560 = vsub.s32 0, %v559
    %v561 = vrot.slane %v557, %v560
    %v562 = vmul.f32 %v488, %v561
    %v563 = vmul.f32 %v489, %v561
    %v564 = vmul.f32 %v490, %v561
    %v565 = vadd.f32 %v474, %v562
    %v566 = vadd.f32 %v475, %v563
    %v567 = vadd.f32 %v476, %v564
    %v568 = vld [vmem:[%s1 + $0x2f] sm:$0x1]
    %v569 = vlaneseq
    %v570 = vshrl.u32 %v569, 7
    %v571 = vsub.s32 0, %v570
    %v572 = vrot.slane %v568, %v571
    %v573 = vmul.f32 %v488, %v572
    %v574 = vmul.f32 %v489, %v572
    %v575 = vmul.f32 %v490, %v572
    %v576 = vadd.f32 %v485, %v573
    %v577 = vadd.f32 %v486, %v574
    %v578 = vadd.f32 %v487, %v575
    %v579 = vld [vmem:[#allocation2 + $0x6] sm:$0xff]
    %v580 = vld [vmem:[#allocation2 + $0xe] sm:$0xff]
    %v581 = vld [vmem:[#allocation2 + $0x16] sm:$0xff]
    %v582 = vld [vmem:[%s1 + $0x30] sm:$0x1]
    %v583 = vlaneseq
    %v584 = vshrl.u32 %v583, 7
    %v585 = vsub.s32 0, %v584
    %v586 = vrot.slane %v582, %v585
    %v587 = vmul.f32 %v579, %v586
    %v588 = vmul.f32 %v580, %v586
    %v589 = vmul.f32 %v581, %v586
    %v590 = vadd.f32 %v499, %v587
    %v591 = vadd.f32 %v500, %v588
    %v592 = vadd.f32 %v501, %v589
    %v593 = vld [vmem:[%s1 + $0x31] sm:$0x1]
    %v594 = vlaneseq
    %v595 = vshrl.u32 %v594, 7
    %v596 = vsub.s32 0, %v595
    %v597 = vrot.slane %v593, %v596
    %v598 = vmul.f32 %v579, %v597
    %v599 = vmul.f32 %v580, %v597
    %v600 = vmul.f32 %v581, %v597
    %v601 = vadd.f32 %v510, %v598
    %v602 = vadd.f32 %v511, %v599
    %v603 = vadd.f32 %v512, %v600
    %v604 = vld [vmem:[%s1 + $0x32] sm:$0x1]
    %v605 = vlaneseq
    %v606 = vshrl.u32 %v605, 7
    %v607 = vsub.s32 0, %v606
    %v608 = vrot.slane %v604, %v607
    %v609 = vmul.f32 %v579, %v608
    %v610 = vmul.f32 %v580, %v608
    %v611 = vmul.f32 %v581, %v608
    %v612 = vadd.f32 %v521, %v609
    %v613 = vadd.f32 %v522, %v610
    %v614 = vadd.f32 %v523, %v611
    %v615 = vld [vmem:[%s1 + $0x33] sm:$0x1]
    %v616 = vlaneseq
    %v617 = vshrl.u32 %v616, 7
    %v618 = vsub.s32 0, %v617
    %v619 = vrot.slane %v615, %v618
    %v620 = vmul.f32 %v579, %v619
    %v621 = vmul.f32 %v580, %v619
    %v622 = vmul.f32 %v581, %v619
    %v623 = vadd.f32 %v532, %v620
    %v624 = vadd.f32 %v533, %v621
    %v625 = vadd.f32 %v534, %v622
    %v626 = vld [vmem:[%s1 + $0x34] sm:$0x1]
    %v627 = vlaneseq
    %v628 = vshrl.u32 %v627, 7
    %v629 = vsub.s32 0, %v628
    %v630 = vrot.slane %v626, %v629
    %v631 = vmul.f32 %v579, %v630
    %v632 = vmul.f32 %v580, %v630
    %v633 = vmul.f32 %v581, %v630
    %v634 = vadd.f32 %v543, %v631
    %v635 = vadd.f32 %v544, %v632
    %v636 = vadd.f32 %v545, %v633
    %v637 = vld [vmem:[%s1 + $0x35] sm:$0x1]
    %v638 = vlaneseq
    %v639 = vshrl.u32 %v638, 7
    %v640 = vsub.s32 0, %v639
    %v641 = vrot.slane %v637, %v640
    %v642 = vmul.f32 %v579, %v641
    %v643 = vmul.f32 %v580, %v641
    %v644 = vmul.f32 %v581, %v641
    %v645 = vadd.f32 %v554, %v642
    %v646 = vadd.f32 %v555, %v643
    %v647 = vadd.f32 %v556, %v644
    %v648 = vld [vmem:[%s1 + $0x36] sm:$0x1]
    %v649 = vlaneseq
    %v650 = vshrl.u32 %v649, 7
    %v651 = vsub.s32 0, %v650
    %v652 = vrot.slane %v648, %v651
    %v653 = vmul.f32 %v579, %v652
    %v654 = vmul.f32 %v580, %v652
    %v655 = vmul.f32 %v581, %v652
    %v656 = vadd.f32 %v565, %v653
    %v657 = vadd.f32 %v566, %v654
    %v658 = vadd.f32 %v567, %v655
    %v659 = vld [vmem:[%s1 + $0x37] sm:$0x1]
    %v660 = vlaneseq
    %v661 = vshrl.u32 %v660, 7
    %v662 = vsub.s32 0, %v661
    %v663 = vrot.slane %v659, %v662
    %v664 = vmul.f32 %v579, %v663
    %v665 = vmul.f32 %v580, %v663
    %v666 = vmul.f32 %v581, %v663
    %v667 = vadd.f32 %v576, %v664
    %v668 = vadd.f32 %v577, %v665
    %v669 = vadd.f32 %v578, %v666
    %v670 = vld [vmem:[#allocation2 + $0x7] sm:$0xff]
    %v671 = vld [vmem:[#allocation2 + $0xf] sm:$0xff]
    %v672 = vld [vmem:[#allocation2 + $0x17] sm:$0xff]
    %v673 = vld [vmem:[%s1 + $0x38] sm:$0x1]
    %v674 = vlaneseq
    %v675 = vshrl.u32 %v674, 7
    %v676 = vsub.s32 0, %v675
    %v677 = vrot.slane %v673, %v676
    %v678 = vmul.f32 %v670, %v677
    %v679 = vmul.f32 %v671, %v677
    %v680 = vmul.f32 %v672, %v677
    %v681 = vadd.f32 %v590, %v678
    %v682 = vadd.f32 %v591, %v679
    %v683 = vadd.f32 %v592, %v680
    %v684 = vld [vmem:[%s1 + $0x39] sm:$0x1]
    %v685 = vlaneseq
    %v686 = vshrl.u32 %v685, 7
    %v687 = vsub.s32 0, %v686
    %v688 = vrot.slane %v684, %v687
    %v689 = vmul.f32 %v670, %v688
    %v690 = vmul.f32 %v671, %v688
    %v691 = vmul.f32 %v672, %v688
    %v692 = vadd.f32 %v601, %v689
    %v693 = vadd.f32 %v602, %v690
    %v694 = vadd.f32 %v603, %v691
    %v695 = vld [vmem:[%s1 + $0x3a] sm:$0x1]
    %v696 = vlaneseq
    %v697 = vshrl.u32 %v696, 7
    %v698 = vsub.s32 0, %v697
    %v699 = vrot.slane %v695, %v698
    %v700 = vmul.f32 %v670, %v699
    %v701 = vmul.f32 %v671, %v699
    %v702 = vmul.f32 %v672, %v699
    %v703 = vadd.f32 %v612, %v700
    %v704 = vadd.f32 %v613, %v701
    %v705 = vadd.f32 %v614, %v702
    %v706 = vld [vmem:[%s1 + $0x3b] sm:$0x1]
    %v707 = vlaneseq
    %v708 = vshrl.u32 %v707, 7
    %v709 = vsub.s32 0, %v708
    %v710 = vrot.slane %v706, %v709
    %v711 = vmul.f32 %v670, %v710
    %v712 = vmul.f32 %v671, %v710
    %v713 = vmul.f32 %v672, %v710
    %v714 = vadd.f32 %v623, %v711
    %v715 = vadd.f32 %v624, %v712
    %v716 = vadd.f32 %v625, %v713
    %v717 = vld [vmem:[%s1 + $0x3c] sm:$0x1]
    %v718 = vlaneseq
    %v719 = vshrl.u32 %v718, 7
    %v720 = vsub.s32 0, %v719
    %v721 = vrot.slane %v717, %v720
    %v722 = vmul.f32 %v670, %v721
    %v723 = vmul.f32 %v671, %v721
    %v724 = vmul.f32 %v672, %v721
    %v725 = vadd.f32 %v634, %v722
    %v726 = vadd.f32 %v635, %v723
    %v727 = vadd.f32 %v636, %v724
    %v728 = vld [vmem:[%s1 + $0x3d] sm:$0x1]
    %v729 = vlaneseq
    %v730 = vshrl.u32 %v729, 7
    %v731 = vsub.s32 0, %v730
    %v732 = vrot.slane %v728, %v731
    %v733 = vmul.f32 %v670, %v732
    %v734 = vmul.f32 %v671, %v732
    %v735 = vmul.f32 %v672, %v732
    %v736 = vadd.f32 %v645, %v733
    %v737 = vadd.f32 %v646, %v734
    %v738 = vadd.f32 %v647, %v735
    %v739 = vld [vmem:[%s1 + $0x3e] sm:$0x1]
    %v740 = vlaneseq
    %v741 = vshrl.u32 %v740, 7
    %v742 = vsub.s32 0, %v741
    %v743 = vrot.slane %v739, %v742
    %v744 = vmul.f32 %v670, %v743
    %v745 = vmul.f32 %v671, %v743
    %v746 = vmul.f32 %v672, %v743
    %v747 = vadd.f32 %v656, %v744
    %v748 = vadd.f32 %v657, %v745
    %v749 = vadd.f32 %v658, %v746
    %v750 = vld [vmem:[%s1 + $0x3f] sm:$0x1]
    %v751 = vlaneseq
    %v752 = vshrl.u32 %v751, 7
    %v753 = vsub.s32 0, %v752
    %v754 = vrot.slane %v750, %v753
    %v755 = vmul.f32 %v670, %v754
    %v756 = vmul.f32 %v671, %v754
    %v757 = vmul.f32 %v672, %v754
    %v758 = vadd.f32 %v667, %v755
    %v759 = vadd.f32 %v668, %v756
    %v760 = vadd.f32 %v669, %v757
    %v761 = vld [vmem:[%s2] sm:$0x1]
    %v763 = vlaneseq
    %v764 = vshrl.u32 %v763, 7
    %v765 = vsub.s32 0, %v764
    %v766 = vrot.slane %v761, %v765
    %v768 = vadd.f32 %v681, %v766
    %v769 = vadd.f32 %v682, %v766
    %v770 = vadd.f32 %v683, %v766
    %771 = vst [vmem:[#allocation3] sm:$0xff] %v768
    %772 = vst [vmem:[#allocation3 + $0x8] sm:$0xff] %v769
    %773 = vst [vmem:[#allocation3 + $0x10] sm:$0xff] %v770
    %v774 = vld [vmem:[#allocation3] sm:$0xff]
    %v775 = vld [vmem:[#allocation3 + $0x8] sm:$0xff]
    %v776 = vld [vmem:[#allocation3 + $0x10] sm:$0xff]
    %780 = vrot.lane.b32.xlu0 %v692, 127
    %v781 = vpop.permute.xlu0 %780
    %782 = vrot.lane.b32.xlu0 %v693, 127
    %v783 = vpop.permute.xlu0 %782
    %784 = vrot.lane.b32.xlu0 %v694, 127
    %v785 = vpop.permute.xlu0 %784
    %v789 = vadd.f32 %v774, %v781
    %v790 = vadd.f32 %v775, %v783
    %v791 = vadd.f32 %v776, %v785
    %vm792 = vcmask 1039360
    %793 = vst.msk [vmem:[#allocation3] sm:$0xff] %vm792, %v789
    %794 = vst.msk [vmem:[#allocation3 + $0x8] sm:$0xff] %vm792, %v790
    %795 = vst.msk [vmem:[#allocation3 + $0x10] sm:$0xff] %vm792, %v791
    %v796 = vld [vmem:[#allocation3] sm:$0xff]
    %v797 = vld [vmem:[#allocation3 + $0x8] sm:$0xff]
    %v798 = vld [vmem:[#allocation3 + $0x10] sm:$0xff]
    %802 = vrot.lane.b32.xlu0 %v703, 126
    %v803 = vpop.permute.xlu0 %802
    %804 = vrot.lane.b32.xlu0 %v704, 126
    %v805 = vpop.permute.xlu0 %804
    %806 = vrot.lane.b32.xlu0 %v705, 126
    %v807 = vpop.permute.xlu0 %806
    %v811 = vadd.f32 %v796, %v803
    %v812 = vadd.f32 %v797, %v805
    %v813 = vadd.f32 %v798, %v807
    %vm814 = vcmask 1031168
    %815 = vst.msk [vmem:[#allocation3] sm:$0xff] %vm814, %v811
    %816 = vst.msk [vmem:[#allocation3 + $0x8] sm:$0xff] %vm814, %v812
    %817 = vst.msk [vmem:[#allocation3 + $0x10] sm:$0xff] %vm814, %v813
    %v818 = vld [vmem:[#allocation3] sm:$0xff]
    %v819 = vld [vmem:[#allocation3 + $0x8] sm:$0xff]
    %v820 = vld [vmem:[#allocation3 + $0x10] sm:$0xff]
    %824 = vrot.lane.b32.xlu0 %v714, 125
    %v825 = vpop.permute.xlu0 %824
    %826 = vrot.lane.b32.xlu0 %v715, 125
    %v827 = vpop.permute.xlu0 %826
    %828 = vrot.lane.b32.xlu0 %v716, 125
    %v829 = vpop.permute.xlu0 %828
    %v833 = vadd.f32 %v818, %v825
    %v834 = vadd.f32 %v819, %v827
    %v835 = vadd.f32 %v820, %v829
    %vm836 = vcmask 1022976
    %837 = vst.msk [vmem:[#allocation3] sm:$0xff] %vm836, %v833
    %838 = vst.msk [vmem:[#allocation3 + $0x8] sm:$0xff] %vm836, %v834
    %839 = vst.msk [vmem:[#allocation3 + $0x10] sm:$0xff] %vm836, %v835
    %v840 = vld [vmem:[#allocation3] sm:$0xff]
    %v841 = vld [vmem:[#allocation3 + $0x8] sm:$0xff]
    %v842 = vld [vmem:[#allocation3 + $0x10] sm:$0xff]
    %846 = vrot.lane.b32.xlu0 %v725, 124
    %v847 = vpop.permute.xlu0 %846
    %848 = vrot.lane.b32.xlu0 %v726, 124
    %v849 = vpop.permute.xlu0 %848
    %850 = vrot.lane.b32.xlu0 %v727, 124
    %v851 = vpop.permute.xlu0 %850
    %v855 = vadd.f32 %v840, %v847
    %v856 = vadd.f32 %v841, %v849
    %v857 = vadd.f32 %v842, %v851
    %vm858 = vcmask 1014784
    %859 = vst.msk [vmem:[#allocation3] sm:$0xff] %vm858, %v855
    %860 = vst.msk [vmem:[#allocation3 + $0x8] sm:$0xff] %vm858, %v856
    %861 = vst.msk [vmem:[#allocation3 + $0x10] sm:$0xff] %vm858, %v857
    %v862 = vld [vmem:[#allocation3] sm:$0xff]
    %v863 = vld [vmem:[#allocation3 + $0x8] sm:$0xff]
    %v864 = vld [vmem:[#allocation3 + $0x10] sm:$0xff]
    %868 = vrot.lane.b32.xlu0 %v736, 123
    %v869 = vpop.permute.xlu0 %868
    %870 = vrot.lane.b32.xlu0 %v737, 123
    %v871 = vpop.permute.xlu0 %870
    %872 = vrot.lane.b32.xlu0 %v738, 123
    %v873 = vpop.permute.xlu0 %872
    %v877 = vadd.f32 %v862, %v869
    %v878 = vadd.f32 %v863, %v871
    %v879 = vadd.f32 %v864, %v873
    %vm880 = vcmask 1006592
    %881 = vst.msk [vmem:[#allocation3] sm:$0xff] %vm880, %v877
    %882 = vst.msk [vmem:[#allocation3 + $0x8] sm:$0xff] %vm880, %v878
    %883 = vst.msk [vmem:[#allocation3 + $0x10] sm:$0xff] %vm880, %v879
    %v884 = vld [vmem:[#allocation3] sm:$0xff]
    %v885 = vld [vmem:[#allocation3 + $0x8] sm:$0xff]
    %v886 = vld [vmem:[#allocation3 + $0x10] sm:$0xff]
    %890 = vrot.lane.b32.xlu0 %v747, 122
    %v891 = vpop.permute.xlu0 %890
    %892 = vrot.lane.b32.xlu0 %v748, 122
    %v893 = vpop.permute.xlu0 %892
    %894 = vrot.lane.b32.xlu0 %v749, 122
    %v895 = vpop.permute.xlu0 %894
    %v899 = vadd.f32 %v884, %v891
    %v900 = vadd.f32 %v885, %v893
    %v901 = vadd.f32 %v886, %v895
    %vm902 = vcmask 998400
    %903 = vst.msk [vmem:[#allocation3] sm:$0xff] %vm902, %v899
    %904 = vst.msk [vmem:[#allocation3 + $0x8] sm:$0xff] %vm902, %v900
    %905 = vst.msk [vmem:[#allocation3 + $0x10] sm:$0xff] %vm902, %v901
    %v906 = vld [vmem:[#allocation3] sm:$0xff]
    %v907 = vld [vmem:[#allocation3 + $0x8] sm:$0xff]
    %v908 = vld [vmem:[#allocation3 + $0x10] sm:$0xff]
    %912 = vrot.lane.b32.xlu0 %v758, 121
    %v913 = vpop.permute.xlu0 %912
    %914 = vrot.lane.b32.xlu0 %v759, 121
    %v915 = vpop.permute.xlu0 %914
    %916 = vrot.lane.b32.xlu0 %v760, 121
    %v917 = vpop.permute.xlu0 %916
    %v921 = vadd.f32 %v906, %v913
    %v922 = vadd.f32 %v907, %v915
    %v923 = vadd.f32 %v908, %v917
    %vm924 = vcmask 990208
    %925 = vst.msk [vmem:[#allocation3] sm:$0xff] %vm924, %v921
    %926 = vst.msk [vmem:[#allocation3 + $0x8] sm:$0xff] %vm924, %v922
    %927 = vst.msk [vmem:[#allocation3 + $0x10] sm:$0xff] %vm924, %v923
    %v928 = vld [vmem:[#allocation3] sm:$0xff]
    %v929 = vld [vmem:[#allocation3 + $0x8] sm:$0xff]
    %v930 = vld [vmem:[#allocation3 + $0x10] sm:$0xff]
    %s931 = smul.u32 %s19, 24
    %s932 = scalar_lea.vmem %s3, %s931
    %933 = vst [vmem:[%s932] sm:$0xff] %v928
    %934 = vst [vmem:[%s932 + $0x8] sm:$0xff] %v929
    %935 = vst [vmem:[%s932 + $0x10] sm:$0xff] %v930
  $region18: #{conv_transpose2d.1} parent=0 // loop_footer
    %s23 = sadd.s32 1, %s19
  $region19: #{conv_transpose2d.1} parent=0 // loop_footer_branch
    %18 = sbr.rel target = $region15
  $region20: #{conv_transpose2d.1} parent=0 // loop_exit
    _
  // Predicated region
  $region21: #{conv_transpose2d.1} parent=0 // pred_check
    _
  $region22: #{conv_transpose2d.1} parent=0 // pred_check_branch
    %937 = sbr.rel (0) target = $region24
  $region23: #{conv_transpose2d.1} parent=0 // pred_region
    _
  $region24: #{conv_transpose2d.1} parent=0 // pred_fallthru
    _
  // Predicated region
  $region25: #{conv_transpose2d.1} parent=0 // pred_check
    _
  $region26: #{conv_transpose2d.1} parent=0 // pred_check_branch
    %939 = sbr.rel (0) target = $region28
  $region27: #{conv_transpose2d.1} parent=0 // pred_region
    _
  $region28: #{conv_transpose2d.1} parent=0 // pred_fallthru
    _

</llo_original>
